<compile_context>
chip_gen: v7x
topology: tpu7x:2x2x1
jax: 0.10.0
libtpu: 0.0.40
codegen_flags: <defaults>
</compile_context>

<pallas_src>
import math
import functools

import jax
import jax.numpy as jnp
from jax import lax
from jax.experimental import pallas as pl
from jax.experimental.pallas import tpu as pltpu


# ----------------------------- in-kernel helpers (f32 elementwise) -----------------------------

def _sigmoid(h):
    return 1.0 / (1.0 + jnp.exp(-h))


def _silu(h):
    return h * _sigmoid(h)


def _gelu(h):  # exact (erf) GELU, matching nn.GELU() default
    return 0.5 * h * (1.0 + lax.erf(h * (1.0 / math.sqrt(2.0))))


# parameter-pack row indices (f32 (16,128) slab)
_R_EB0, _R_EB1, _R_EB2 = 0, 1, 2           # encoder GCN biases (padded to 128 lanes)
_R_BN_S, _R_BN_T = 3, 4                    # folded BatchNorm scale / shift (synth head)
_R_SY2_W, _R_SY2_B = 5, 6                  # synth2 weight row / bias-at-lane-0 row
_R_FL2_W, _R_FL2_B = 7, 8                  # flip2 weight row / bias-at-lane-0 row
_R_LN_G, _R_LN_B = 9, 10                   # LayerNorm gamma / beta (noise head)
_R_NO2_B = 11                              # noise2 bias (input_dim == 128)


# ----------------------------- fused forward kernel -----------------------------

def _fused_forward_kernel(
    a_ref, x_ref,                 # bf16: normalized adjacency (N,N), features (N,din)
    ew0_ref, ew1_ref, ew2_ref,    # bf16: encoder GCN weights, padded to 128-lane widths
    zw_ref,                       # bf16: [128, 512] = dec1 | synth1 | noise1 | flip1 (+ folded biases)
    dec2_w_ref,                   # bf16: [128, din]  (row latent_dim = dec2 bias)
    noise2_w_ref,                 # bf16: [128, din]
    p_ref,                        # f32:  (16, 128) coalesced small-parameter pack
    recon_ref, noise_ref, packed_ref,
    *, latent_dim,
):
    n = a_ref.shape[0]
    a = a_ref[...]                                # VMEM-resident bf16 adjacency

    def gcn(h_bf16, w_ref, b_row):
        # GCNConv: A_hat @ (H @ W) + b — both matmuls on the MXU, f32 accumulate
        hw = jnp.dot(h_bf16, w_ref[...], preferred_element_type=jnp.float32)
        out = jnp.dot(a, hw.astype(jnp.bfloat16), preferred_element_type=jnp.float32)
        return out + b_row

    # ---- encoder: [GCN -> ReLU -> Dropout(eval: id)] x2, then GCN to latent ----
    h = jnp.maximum(gcn(x_ref[...], ew0_ref, p_ref[_R_EB0:_R_EB0 + 1, :]), 0.0)
    h = jnp.maximum(gcn(h.astype(jnp.bfloat16), ew1_ref, p_ref[_R_EB1:_R_EB1 + 1, :]), 0.0)
    # z: lanes 0..latent_dim-1 = latent, lane latent_dim = 1.0 (constant for bias folding), rest 0
    z = gcn(h.astype(jnp.bfloat16), ew2_ref, p_ref[_R_EB2:_R_EB2 + 1, :])

    # ---- one wide MXU matmul for every consumer of z (biases folded via z's constant lane) ----
    zcat = jnp.dot(z.astype(jnp.bfloat16), zw_ref[...],
                   preferred_element_type=jnp.float32)        # (N, 512), 128-lane segments

    # ---- decoder: Linear -> ReLU -> Linear (dec2 bias folded via constant-1 lane of d) ----
    d = jnp.maximum(zcat[:, 0:128], 0.0)
    recon_ref[...] = jnp.dot(d.astype(jnp.bfloat16), dec2_w_ref[...],
                             preferred_element_type=jnp.float32)

    # ---- SyntheticHead: Linear -> BN(eval, folded) -> SiLU -> Linear(64->1) -> sigmoid ----
    s = zcat[:, 128:256] * p_ref[_R_BN_S:_R_BN_S + 1, :] + p_ref[_R_BN_T:_R_BN_T + 1, :]
    s = _silu(s)
    # 64->1 projection as VPU multiply + lane reduce; bias injected via a single-lane bias row
    synth = _sigmoid(jnp.sum(s * p_ref[_R_SY2_W:_R_SY2_W + 1, :]
                             + p_ref[_R_SY2_B:_R_SY2_B + 1, :], axis=-1, keepdims=True))

    # ---- NoiseHead: Linear -> LayerNorm(128) -> GELU -> Linear -> sigmoid ----
    y = zcat[:, 256:384]
    mu = jnp.mean(y, axis=-1, keepdims=True)
    var = jnp.mean(jnp.square(y - mu), axis=-1, keepdims=True)
    y = (y - mu) * lax.rsqrt(var + 1e-5) * p_ref[_R_LN_G:_R_LN_G + 1, :] \
        + p_ref[_R_LN_B:_R_LN_B + 1, :]
    g = _gelu(y)
    noise_ref[...] = _sigmoid(
        jnp.dot(g.astype(jnp.bfloat16), noise2_w_ref[...], preferred_element_type=jnp.float32)
        + p_ref[_R_NO2_B:_R_NO2_B + 1, :])

    # ---- LabelFlipHead: Linear -> LeakyReLU(0.2) -> Linear(32->1), raw logits ----
    f = zcat[:, 384:512]
    f = jnp.where(f >= 0.0, f, 0.2 * f)
    flip = jnp.sum(f * p_ref[_R_FL2_W:_R_FL2_W + 1, :]
                   + p_ref[_R_FL2_B:_R_FL2_B + 1, :], axis=-1, keepdims=True)

    # ---- lane-dense merged output: lanes 0..latent-1 = z, lane latent = synth, lane latent+1 = flip
    lane = lax.broadcasted_iota(jnp.int32, (n, 128), 1)
    packed_ref[...] = jnp.where(lane == latent_dim, synth,
                                jnp.where(lane == latent_dim + 1, flip, z))


# ----------------------------- wrapper (single pallas_call) -----------------------------

def _full_spec(shape):
    nd = len(shape)
    return pl.BlockSpec(shape, lambda *_: (0,) * nd)


def make_fused_forward(latent_dim, input_dim):
    kernel = functools.partial(_fused_forward_kernel, latent_dim=latent_dim)

    @jax.jit
    def fwd(a_hat, x, ew0, ew1, ew2, zw, dec2_w, noise2_w, pack):
        n = x.shape[0]
        inputs = (a_hat.astype(jnp.bfloat16), x.astype(jnp.bfloat16),
                  ew0, ew1, ew2, zw, dec2_w, noise2_w, pack)
        out_shapes = (
            jax.ShapeDtypeStruct((n, input_dim), jnp.float32),   # recon
            jax.ShapeDtypeStruct((n, input_dim), jnp.float32),   # noise
            jax.ShapeDtypeStruct((n, 128), jnp.float32),         # packed latent | synth | flip
        )
        recon, noise, packed = pl.pallas_call(
            kernel,
            out_shape=out_shapes,
            grid=(1,),
            in_specs=[_full_spec(arr.shape) for arr in inputs],
            out_specs=[_full_spec(s.shape) for s in out_shapes],
            compiler_params=pltpu.CompilerParams(dimension_semantics=("arbitrary",)),
        )(*inputs)
        return {
            "recon": recon,
            "latent": packed[:, :latent_dim],
            "synth": packed[:, latent_dim:latent_dim + 1],
            "flip": packed[:, latent_dim + 1:latent_dim + 2],
            "noise": noise,
        }

    return fwd


# ----------------------------- parameter init (deterministic) -----------------------------

def _uniform(key, shape, bound):
    return jax.random.uniform(key, shape, jnp.float32, -bound, bound)


def linear_params(key, fan_in, fan_out):
    k1, k2 = jax.random.split(key)
    bound = 1.0 / math.sqrt(fan_in)
    return _uniform(k1, (fan_in, fan_out), bound), _uniform(k2, (fan_out,), bound)


def gcn_params(key, fan_in, fan_out):
    # PyG GCNConv: glorot weight, zero bias
    bound = math.sqrt(6.0 / (fan_in + fan_out))
    return _uniform(key, (fan_in, fan_out), bound), jnp.zeros((fan_out,), jnp.float32)


def init_params(key, cfg):
    keys = jax.random.split(key, 16)
    p = {}
    dims = [cfg["input_dim"]] + cfg["hidden_dims"] + [cfg["latent_dim"]]
    p["encoder"] = [gcn_params(keys[i], dims[i], dims[i + 1]) for i in range(len(dims) - 1)]
    p["dec1"] = linear_params(keys[5], cfg["latent_dim"], cfg["hidden_dims"][-1])
    p["dec2"] = linear_params(keys[6], cfg["hidden_dims"][-1], cfg["input_dim"])
    p["synth1"] = linear_params(keys[7], cfg["latent_dim"], 64)
    p["synth2"] = linear_params(keys[8], 64, 1)
    eps = 1e-5
    p["synth_bn_scale"] = jnp.ones((64,), jnp.float32) / jnp.sqrt(1.0 + eps)   # gamma/sqrt(rv+eps)
    p["synth_bn_shift"] = jnp.zeros((64,), jnp.float32)                         # beta - rm*scale
    p["flip1"] = linear_params(keys[9], cfg["latent_dim"], 32)
    p["flip2"] = linear_params(keys[10], 32, 1)
    p["noise1"] = linear_params(keys[11], cfg["latent_dim"], 128)
    p["noise_ln_g"] = jnp.ones((128,), jnp.float32)
    p["noise_ln_b"] = jnp.zeros((128,), jnp.float32)
    p["noise2"] = linear_params(keys[12], 128, cfg["input_dim"])
    return p


def prepare_kernel_operands(params, cfg):
    """Pack parameters into lane-aligned bf16 weight slabs + one coalesced f32 parameter slab."""
    latent = cfg["latent_dim"]
    din = cfg["input_dim"]
    assert latent + 2 <= 128, "packed output assumes latent_dim + 2 <= 128"
    assert din == 128, "f32 parameter pack assumes input_dim == 128 (noise2 bias row)"

    def pad_vec(v, width=128):
        return jnp.pad(v, (0, width - v.shape[0]))

    def pad_mat(w, rows=128, cols=128):
        return jnp.pad(w, ((0, rows - w.shape[0]), (0, cols - w.shape[1])))

    (w0, b0), (w1, b1), (w2, b2) = params["encoder"]
    ew0 = pad_mat(w0, rows=w0.shape[0]).astype(jnp.bfloat16)    # (din, 128)
    ew1 = pad_mat(w1).astype(jnp.bfloat16)                      # (128, 128)
    ew2 = pad_mat(w2).astype(jnp.bfloat16)                      # (128, 128)

    eb0 = pad_vec(b0)
    eb1 = pad_vec(b1)
    eb2 = pad_vec(b2).at[latent].set(1.0)    # constant-1 lane of z → folds z-consumer biases

    def seg(w, b, one_lane=None):
        # 128x128 segment: rows 0..latent-1 = weight (cols zero-padded), row latent = bias
        s = jnp.zeros((128, 128), jnp.float32)
        s = s.at[:w.shape[0], :w.shape[1]].set(w)
        s = s.at[latent, :b.shape[0]].set(b)
        if one_lane is not None:              # constant-1 lane propagated into dec hidden (dec2 bias)
            s = s.at[latent, one_lane].set(1.0)
        return s

    zw = jnp.concatenate([
        seg(params["dec1"][0], params["dec1"][1], one_lane=latent),
        seg(params["synth1"][0], params["synth1"][1]),
        seg(params["noise1"][0], params["noise1"][1]),
        seg(params["flip1"][0], params["flip1"][1]),
    ], axis=1).astype(jnp.bfloat16)                              # (128, 512)

    dec2 = jnp.zeros((128, din), jnp.float32)
    dec2 = dec2.at[:params["dec2"][0].shape[0], :].set(params["dec2"][0])
    dec2 = dec2.at[latent, :].set(params["dec2"][1]).astype(jnp.bfloat16)   # (128, din)

    noise2_w = params["noise2"][0].astype(jnp.bfloat16)          # (128, din)

    rows = [None] * 16
    rows[_R_EB0], rows[_R_EB1], rows[_R_EB2] = eb0, eb1, eb2
    rows[_R_BN_S] = pad_vec(params["synth_bn_scale"])
    rows[_R_BN_T] = pad_vec(params["synth_bn_shift"])
    rows[_R_SY2_W] = pad_vec(params["synth2"][0].reshape(-1))
    rows[_R_SY2_B] = jnp.zeros((128,), jnp.float32).at[0].set(params["synth2"][1][0])
    rows[_R_FL2_W] = pad_vec(params["flip2"][0].reshape(-1))
    rows[_R_FL2_B] = jnp.zeros((128,), jnp.float32).at[0].set(params["flip2"][1][0])
    rows[_R_LN_G] = params["noise_ln_g"]
    rows[_R_LN_B] = params["noise_ln_b"]
    rows[_R_NO2_B] = params["noise2"][1]
    zero = jnp.zeros((128,), jnp.float32)
    pack = jnp.stack([r if r is not None else zero for r in rows], axis=0).astype(jnp.float32)

    return ew0, ew1, ew2, zw, dec2, noise2_w, pack


# ----------------------------- glue: normalized adjacency -----------------------------

def gcn_norm_adj(edge_index, num_nodes):
    """Dense A_hat = D^{-1/2} (A + I) D^{-1/2}, matching PyG gcn_norm (add_self_loops=True)."""
    src, dst = edge_index[0], edge_index[1]
    a = jnp.zeros((num_nodes, num_nodes), jnp.float32).at[dst, src].add(1.0)
    a = a + jnp.eye(num_nodes, dtype=jnp.float32)
    deg = a.sum(axis=1)
    dinv = jnp.where(deg > 0, 1.0 / jnp.sqrt(deg), 0.0)
    return dinv[:, None] * a * dinv[None, :]


# ----------------------------- pure-JAX f32 reference (for validation) -----------------------------

def reference_forward(params, x, a_hat):
    def gcn(h, w, b):
        return a_hat @ (h @ w) + b

    h = x
    for (w, b) in params["encoder"][:-1]:
        h = jnp.maximum(gcn(h, w, b), 0.0)
    w, b = params["encoder"][-1]
    z = gcn(h, w, b)

    d = jnp.maximum(z @ params["dec1"][0] + params["dec1"][1], 0.0)
    recon = d @ params["dec2"][0] + params["dec2"][1]

    s = z @ params["synth1"][0] + params["synth1"][1]
    s = s * params["synth_bn_scale"] + params["synth_bn_shift"]
    s = s * jax.nn.sigmoid(s)
    synth = jax.nn.sigmoid(s @ params["synth2"][0] + params["synth2"][1])

    f = z @ params["flip1"][0] + params["flip1"][1]
    f = jnp.where(f >= 0.0, f, 0.2 * f)
    flip = f @ params["flip2"][0] + params["flip2"][1]

    y = z @ params["noise1"][0] + params["noise1"][1]
    mu = y.mean(-1, keepdims=True)
    var = ((y - mu) ** 2).mean(-1, keepdims=True)
    y = (y - mu) / jnp.sqrt(var + 1e-5) * params["noise_ln_g"] + params["noise_ln_b"]
    g = 0.5 * y * (1.0 + lax.erf(y / math.sqrt(2.0)))
    noise = jax.nn.sigmoid(g @ params["noise2"][0] + params["noise2"][1])

    return {"recon": recon, "latent": z, "synth": synth, "flip": flip, "noise": noise}


# ----------------------------- main -----------------------------

if __name__ == "__main__":
    cfg = {
        "SynCell": True, "LabelFlip": True, "InjNoise": True,
        "input_dim": 128, "hidden_dims": [64, 64], "num_conv_layers": 2,
        "latent_dim": 64, "conv_type": "GCN",
    }

    key = jax.random.PRNGKey(0)
    k_x, k_e, k_p = jax.random.split(key, 3)

    N_NODES, N_EDGES = 64, 256
    x = jax.random.normal(k_x, (N_NODES, cfg["input_dim"]), jnp.float32)
    edge_index = jax.random.randint(k_e, (2, N_EDGES), 0, N_NODES, dtype=jnp.int32)

    a_hat = gcn_norm_adj(edge_index, N_NODES)
    params = init_params(k_p, cfg)
    operands = prepare_kernel_operands(params, cfg)

    fused_forward = make_fused_forward(cfg["latent_dim"], cfg["input_dim"])
    outputs = jax.block_until_ready(fused_forward(a_hat, x, *operands))

    # shape / sanity checks
    assert outputs["recon"].shape == (N_NODES, cfg["input_dim"])
    assert outputs["latent"].shape == (N_NODES, cfg["latent_dim"])
    assert outputs["synth"].shape == (N_NODES, 1)
    assert outputs["flip"].shape == (N_NODES, 1)
    assert outputs["noise"].shape == (N_NODES, cfg["input_dim"])
    for v in outputs.values():
        assert bool(jnp.all(jnp.isfinite(v)))
    assert bool(jnp.all((outputs["synth"] >= 0) & (outputs["synth"] <= 1)))
    assert bool(jnp.all((outputs["noise"] >= 0) & (outputs["noise"] <= 1)))

    # numerical check against pure-JAX f32 reference.
    # NOTE: bf16 matmul operands (A_hat, X, weights) are an intentional precision choice for the
    # MXU; f32 accumulation bounds the error — hence the loose tolerances below.
    ref = reference_forward(params, x, a_hat)

    def maxdiff(a, b):
        return float(jnp.max(jnp.abs(a - b)))

    assert maxdiff(outputs["latent"], ref["latent"]) < 0.1
    assert maxdiff(outputs["recon"], ref["recon"]) < 0.1
    assert maxdiff(outputs["flip"], ref["flip"]) < 0.1
    assert maxdiff(outputs["synth"], ref["synth"]) < 0.05
    assert maxdiff(outputs["noise"], ref["noise"]) < 0.05

    print("KERNEL_OK")
</pallas_src>

<mosaic_0001>
module attributes {stable_mosaic.version = 11 : i64} {
  func.func @_fused_forward_kernel(%arg0: i32, %arg1: memref<64x64xbf16, #tpu.memory_space<vmem>>, %arg2: memref<64x128xbf16, #tpu.memory_space<vmem>>, %arg3: memref<128x128xbf16, #tpu.memory_space<vmem>>, %arg4: memref<128x128xbf16, #tpu.memory_space<vmem>>, %arg5: memref<128x128xbf16, #tpu.memory_space<vmem>>, %arg6: memref<128x512xbf16, #tpu.memory_space<vmem>>, %arg7: memref<128x128xbf16, #tpu.memory_space<vmem>>, %arg8: memref<128x128xbf16, #tpu.memory_space<vmem>>, %arg9: memref<16x128xf32, #tpu.memory_space<vmem>>, %arg10: memref<64x128xf32, #tpu.memory_space<vmem>>, %arg11: memref<64x128xf32, #tpu.memory_space<vmem>>, %arg12: memref<64x128xf32, #tpu.memory_space<vmem>>) attributes {dimension_semantics = [#tpu.dimension_semantics<arbitrary>], iteration_bounds = array<i64: 1>, scalar_prefetch = 0 : i64, scratch_operands = 0 : i64, tpu.core_type = #tpu.core_type<tc>, window_params = [{pipeline_mode = #tpu.pipeline_mode<synchronous>, transform_indices = @transform_0, window_bounds = array<i64: 64, 64>}, {pipeline_mode = #tpu.pipeline_mode<synchronous>, transform_indices = @transform_1, window_bounds = array<i64: 64, 128>}, {pipeline_mode = #tpu.pipeline_mode<synchronous>, transform_indices = @transform_2, window_bounds = array<i64: 128, 128>}, {pipeline_mode = #tpu.pipeline_mode<synchronous>, transform_indices = @transform_3, window_bounds = array<i64: 128, 128>}, {pipeline_mode = #tpu.pipeline_mode<synchronous>, transform_indices = @transform_4, window_bounds = array<i64: 128, 128>}, {pipeline_mode = #tpu.pipeline_mode<synchronous>, transform_indices = @transform_5, window_bounds = array<i64: 128, 512>}, {pipeline_mode = #tpu.pipeline_mode<synchronous>, transform_indices = @transform_6, window_bounds = array<i64: 128, 128>}, {pipeline_mode = #tpu.pipeline_mode<synchronous>, transform_indices = @transform_7, window_bounds = array<i64: 128, 128>}, {pipeline_mode = #tpu.pipeline_mode<synchronous>, transform_indices = @transform_8, window_bounds = array<i64: 16, 128>}, {pipeline_mode = #tpu.pipeline_mode<synchronous>, transform_indices = @transform_9, window_bounds = array<i64: 64, 128>}, {pipeline_mode = #tpu.pipeline_mode<synchronous>, transform_indices = @transform_10, window_bounds = array<i64: 64, 128>}, {pipeline_mode = #tpu.pipeline_mode<synchronous>, transform_indices = @transform_11, window_bounds = array<i64: 64, 128>}]} {
    %c0 = arith.constant 0 : index
    %c0_0 = arith.constant 0 : index
    %0 = vector.load %arg1[%c0, %c0_0] : memref<64x64xbf16, #tpu.memory_space<vmem>>, vector<64x64xbf16>
    %c0_1 = arith.constant 0 : index
    %c0_2 = arith.constant 0 : index
    %1 = vector.load %arg2[%c0_1, %c0_2] : memref<64x128xbf16, #tpu.memory_space<vmem>>, vector<64x128xbf16>
    %c0_3 = arith.constant 0 : index
    %c0_4 = arith.constant 0 : index
    %2 = vector.load %arg9[%c0_3, %c0_4] : memref<16x128xf32, #tpu.memory_space<vmem>>, vector<1x128xf32>
    %c0_5 = arith.constant 0 : index
    %c0_6 = arith.constant 0 : index
    %3 = vector.load %arg3[%c0_5, %c0_6] : memref<128x128xbf16, #tpu.memory_space<vmem>>, vector<128x128xbf16>
    %cst = arith.constant dense<0.000000e+00> : vector<64x128xf32>
    %4 = tpu.matmul %1, %3, %cst {dimension_numbers = #tpu.dot_dimension_numbers<[1], [0], [0], [1], [0, 0, 1, 1], [], []>} : vector<64x128xbf16>, vector<128x128xbf16>, vector<64x128xf32> -> vector<64x128xf32>
    %5 = arith.truncf %4 : vector<64x128xf32> to vector<64x128xbf16>
    %cst_7 = arith.constant dense<0.000000e+00> : vector<64x128xf32>
    %6 = tpu.matmul %0, %5, %cst_7 {dimension_numbers = #tpu.dot_dimension_numbers<[1], [0], [0], [1], [0, 0, 1, 1], [], []>} : vector<64x64xbf16>, vector<64x128xbf16>, vector<64x128xf32> -> vector<64x128xf32>
    %7 = vector.broadcast %2 : vector<1x128xf32> to vector<64x128xf32>
    %8 = arith.addf %6, %7 : vector<64x128xf32>
    %cst_8 = arith.constant 0.000000e+00 : f32
    %9 = vector.broadcast %cst_8 : f32 to vector<64x128xf32>
    %10 = arith.maximumf %8, %9 : vector<64x128xf32>
    %11 = arith.truncf %10 : vector<64x128xf32> to vector<64x128xbf16>
    %c1 = arith.constant 1 : index
    %c0_9 = arith.constant 0 : index
    %12 = vector.load %arg9[%c1, %c0_9] : memref<16x128xf32, #tpu.memory_space<vmem>>, vector<1x128xf32>
    %c0_10 = arith.constant 0 : index
    %c0_11 = arith.constant 0 : index
    %13 = vector.load %arg4[%c0_10, %c0_11] : memref<128x128xbf16, #tpu.memory_space<vmem>>, vector<128x128xbf16>
    %cst_12 = arith.constant dense<0.000000e+00> : vector<64x128xf32>
    %14 = tpu.matmul %11, %13, %cst_12 {dimension_numbers = #tpu.dot_dimension_numbers<[1], [0], [0], [1], [0, 0, 1, 1], [], []>} : vector<64x128xbf16>, vector<128x128xbf16>, vector<64x128xf32> -> vector<64x128xf32>
    %15 = arith.truncf %14 : vector<64x128xf32> to vector<64x128xbf16>
    %cst_13 = arith.constant dense<0.000000e+00> : vector<64x128xf32>
    %16 = tpu.matmul %0, %15, %cst_13 {dimension_numbers = #tpu.dot_dimension_numbers<[1], [0], [0], [1], [0, 0, 1, 1], [], []>} : vector<64x64xbf16>, vector<64x128xbf16>, vector<64x128xf32> -> vector<64x128xf32>
    %17 = vector.broadcast %12 : vector<1x128xf32> to vector<64x128xf32>
    %18 = arith.addf %16, %17 : vector<64x128xf32>
    %cst_14 = arith.constant 0.000000e+00 : f32
    %19 = vector.broadcast %cst_14 : f32 to vector<64x128xf32>
    %20 = arith.maximumf %18, %19 : vector<64x128xf32>
    %21 = arith.truncf %20 : vector<64x128xf32> to vector<64x128xbf16>
    %c2 = arith.constant 2 : index
    %c0_15 = arith.constant 0 : index
    %22 = vector.load %arg9[%c2, %c0_15] : memref<16x128xf32, #tpu.memory_space<vmem>>, vector<1x128xf32>
    %c0_16 = arith.constant 0 : index
    %c0_17 = arith.constant 0 : index
    %23 = vector.load %arg5[%c0_16, %c0_17] : memref<128x128xbf16, #tpu.memory_space<vmem>>, vector<128x128xbf16>
    %cst_18 = arith.constant dense<0.000000e+00> : vector<64x128xf32>
    %24 = tpu.matmul %21, %23, %cst_18 {dimension_numbers = #tpu.dot_dimension_numbers<[1], [0], [0], [1], [0, 0, 1, 1], [], []>} : vector<64x128xbf16>, vector<128x128xbf16>, vector<64x128xf32> -> vector<64x128xf32>
    %25 = arith.truncf %24 : vector<64x128xf32> to vector<64x128xbf16>
    %cst_19 = arith.constant dense<0.000000e+00> : vector<64x128xf32>
    %26 = tpu.matmul %0, %25, %cst_19 {dimension_numbers = #tpu.dot_dimension_numbers<[1], [0], [0], [1], [0, 0, 1, 1], [], []>} : vector<64x64xbf16>, vector<64x128xbf16>, vector<64x128xf32> -> vector<64x128xf32>
    %27 = vector.broadcast %22 : vector<1x128xf32> to vector<64x128xf32>
    %28 = arith.addf %26, %27 : vector<64x128xf32>
    %29 = arith.truncf %28 : vector<64x128xf32> to vector<64x128xbf16>
    %c0_20 = arith.constant 0 : index
    %c0_21 = arith.constant 0 : index
    %30 = vector.load %arg6[%c0_20, %c0_21] : memref<128x512xbf16, #tpu.memory_space<vmem>>, vector<128x512xbf16>
    %cst_22 = arith.constant dense<0.000000e+00> : vector<64x512xf32>
    %31 = tpu.matmul %29, %30, %cst_22 {dimension_numbers = #tpu.dot_dimension_numbers<[1], [0], [0], [1], [0, 0, 1, 1], [], []>} : vector<64x128xbf16>, vector<128x512xbf16>, vector<64x512xf32> -> vector<64x512xf32>
    %32 = vector.extract_strided_slice %31 {offsets = [0, 0], sizes = [64, 128], strides = [1, 1]} : vector<64x512xf32> to vector<64x128xf32>
    %cst_23 = arith.constant 0.000000e+00 : f32
    %33 = vector.broadcast %cst_23 : f32 to vector<64x128xf32>
    %34 = arith.maximumf %32, %33 : vector<64x128xf32>
    %35 = arith.truncf %34 : vector<64x128xf32> to vector<64x128xbf16>
    %c0_24 = arith.constant 0 : index
    %c0_25 = arith.constant 0 : index
    %36 = vector.load %arg7[%c0_24, %c0_25] : memref<128x128xbf16, #tpu.memory_space<vmem>>, vector<128x128xbf16>
    %cst_26 = arith.constant dense<0.000000e+00> : vector<64x128xf32>
    %37 = tpu.matmul %35, %36, %cst_26 {dimension_numbers = #tpu.dot_dimension_numbers<[1], [0], [0], [1], [0, 0, 1, 1], [], []>} : vector<64x128xbf16>, vector<128x128xbf16>, vector<64x128xf32> -> vector<64x128xf32>
    %c0_27 = arith.constant 0 : index
    %c0_28 = arith.constant 0 : index
    %38 = vector.load %arg10[%c0_27, %c0_28] : memref<64x128xf32, #tpu.memory_space<vmem>>, vector<64x128xf32>
    tpu.vector_store %arg10[%c0_27, %c0_28], %37 {strides = array<i32>} : memref<64x128xf32, #tpu.memory_space<vmem>>, vector<64x128xf32>,
    %39 = vector.extract_strided_slice %31 {offsets = [0, 128], sizes = [64, 128], strides = [1, 1]} : vector<64x512xf32> to vector<64x128xf32>
    %c3 = arith.constant 3 : index
    %c0_29 = arith.constant 0 : index
    %40 = vector.load %arg9[%c3, %c0_29] : memref<16x128xf32, #tpu.memory_space<vmem>>, vector<1x128xf32>
    %41 = vector.broadcast %40 : vector<1x128xf32> to vector<64x128xf32>
    %42 = arith.mulf %39, %41 : vector<64x128xf32>
    %c4 = arith.constant 4 : index
    %c0_30 = arith.constant 0 : index
    %43 = vector.load %arg9[%c4, %c0_30] : memref<16x128xf32, #tpu.memory_space<vmem>>, vector<1x128xf32>
    %44 = vector.broadcast %43 : vector<1x128xf32> to vector<64x128xf32>
    %45 = arith.addf %42, %44 : vector<64x128xf32>
    %cst_31 = arith.constant 0.000000e+00 : f32
    %46 = vector.broadcast %cst_31 : f32 to vector<64x128xf32>
    %47 = arith.subf %46, %45 : vector<64x128xf32>
    %48 = math.exp %47 : vector<64x128xf32>
    %cst_32 = arith.constant 1.000000e+00 : f32
    %49 = vector.broadcast %cst_32 : f32 to vector<64x128xf32>
    %50 = arith.addf %49, %48 : vector<64x128xf32>
    %cst_33 = arith.constant 1.000000e+00 : f32
    %51 = vector.broadcast %cst_33 : f32 to vector<64x128xf32>
    %52 = arith.divf %51, %50 : vector<64x128xf32>
    %53 = arith.mulf %45, %52 : vector<64x128xf32>
    %c5 = arith.constant 5 : index
    %c0_34 = arith.constant 0 : index
    %54 = vector.load %arg9[%c5, %c0_34] : memref<16x128xf32, #tpu.memory_space<vmem>>, vector<1x128xf32>
    %55 = vector.broadcast %54 : vector<1x128xf32> to vector<64x128xf32>
    %56 = arith.mulf %53, %55 : vector<64x128xf32>
    %c6 = arith.constant 6 : index
    %c0_35 = arith.constant 0 : index
    %57 = vector.load %arg9[%c6, %c0_35] : memref<16x128xf32, #tpu.memory_space<vmem>>, vector<1x128xf32>
    %58 = vector.broadcast %57 : vector<1x128xf32> to vector<64x128xf32>
    %59 = arith.addf %56, %58 : vector<64x128xf32>
    %cst_36 = arith.constant dense<0.000000e+00> : vector<64xf32>
    %60 = vector.multi_reduction <add>, %59, %cst_36 [1] : vector<64x128xf32> to vector<64xf32>
    %61 = vector.shape_cast %60 : vector<64xf32> to vector<64x1xf32>
    %cst_37 = arith.constant 0.000000e+00 : f32
    %62 = vector.broadcast %cst_37 : f32 to vector<64x1xf32>
    %63 = arith.subf %62, %61 : vector<64x1xf32>
    %64 = math.exp %63 : vector<64x1xf32>
    %cst_38 = arith.constant 1.000000e+00 : f32
    %65 = vector.broadcast %cst_38 : f32 to vector<64x1xf32>
    %66 = arith.addf %65, %64 : vector<64x1xf32>
    %cst_39 = arith.constant 1.000000e+00 : f32
    %67 = vector.broadcast %cst_39 : f32 to vector<64x1xf32>
    %68 = arith.divf %67, %66 : vector<64x1xf32>
    %69 = vector.extract_strided_slice %31 {offsets = [0, 256], sizes = [64, 128], strides = [1, 1]} : vector<64x512xf32> to vector<64x128xf32>
    %cst_40 = arith.constant dense<0.000000e+00> : vector<64xf32>
    %70 = vector.multi_reduction <add>, %69, %cst_40 [1] : vector<64x128xf32> to vector<64xf32>
    %71 = vector.shape_cast %70 : vector<64xf32> to vector<64x1xf32>
    %cst_41 = arith.constant 1.280000e+02 : f32
    %72 = vector.broadcast %cst_41 : f32 to vector<64x1xf32>
    %73 = arith.divf %71, %72 : vector<64x1xf32>
    %74 = vector.broadcast %73 : vector<64x1xf32> to vector<64x128xf32>
    %75 = arith.subf %69, %74 : vector<64x128xf32>
    %76 = arith.mulf %75, %75 : vector<64x128xf32>
    %cst_42 = arith.constant dense<0.000000e+00> : vector<64xf32>
    %77 = vector.multi_reduction <add>, %76, %cst_42 [1] : vector<64x128xf32> to vector<64xf32>
    %78 = vector.shape_cast %77 : vector<64xf32> to vector<64x1xf32>
    %cst_43 = arith.constant 1.280000e+02 : f32
    %79 = vector.broadcast %cst_43 : f32 to vector<64x1xf32>
    %80 = arith.divf %78, %79 : vector<64x1xf32>
    %81 = vector.broadcast %73 : vector<64x1xf32> to vector<64x128xf32>
    %82 = arith.subf %69, %81 : vector<64x128xf32>
    %cst_44 = arith.constant 9.99999974E-6 : f32
    %83 = vector.broadcast %cst_44 : f32 to vector<64x1xf32>
    %84 = arith.addf %80, %83 : vector<64x1xf32>
    %85 = math.rsqrt %84 : vector<64x1xf32>
    %86 = vector.broadcast %85 : vector<64x1xf32> to vector<64x128xf32>
    %87 = arith.mulf %82, %86 : vector<64x128xf32>
    %c9 = arith.constant 9 : index
    %c0_45 = arith.constant 0 : index
    %88 = vector.load %arg9[%c9, %c0_45] : memref<16x128xf32, #tpu.memory_space<vmem>>, vector<1x128xf32>
    %89 = vector.broadcast %88 : vector<1x128xf32> to vector<64x128xf32>
    %90 = arith.mulf %87, %89 : vector<64x128xf32>
    %c10 = arith.constant 10 : index
    %c0_46 = arith.constant 0 : index
    %91 = vector.load %arg9[%c10, %c0_46] : memref<16x128xf32, #tpu.memory_space<vmem>>, vector<1x128xf32>
    %92 = vector.broadcast %91 : vector<1x128xf32> to vector<64x128xf32>
    %93 = arith.addf %90, %92 : vector<64x128xf32>
    %cst_47 = arith.constant 5.000000e-01 : f32
    %94 = vector.broadcast %cst_47 : f32 to vector<64x128xf32>
    %95 = arith.mulf %94, %93 : vector<64x128xf32>
    %cst_48 = arith.constant 0.707106769 : f32
    %96 = vector.broadcast %cst_48 : f32 to vector<64x128xf32>
    %97 = arith.mulf %93, %96 : vector<64x128xf32>
    %98 = math.erf %97 : vector<64x128xf32>
    %cst_49 = arith.constant 1.000000e+00 : f32
    %99 = vector.broadcast %cst_49 : f32 to vector<64x128xf32>
    %100 = arith.addf %99, %98 : vector<64x128xf32>
    %101 = arith.mulf %95, %100 : vector<64x128xf32>
    %102 = arith.truncf %101 : vector<64x128xf32> to vector<64x128xbf16>
    %c0_50 = arith.constant 0 : index
    %c0_51 = arith.constant 0 : index
    %103 = vector.load %arg8[%c0_50, %c0_51] : memref<128x128xbf16, #tpu.memory_space<vmem>>, vector<128x128xbf16>
    %cst_52 = arith.constant dense<0.000000e+00> : vector<64x128xf32>
    %104 = tpu.matmul %102, %103, %cst_52 {dimension_numbers = #tpu.dot_dimension_numbers<[1], [0], [0], [1], [0, 0, 1, 1], [], []>} : vector<64x128xbf16>, vector<128x128xbf16>, vector<64x128xf32> -> vector<64x128xf32>
    %c11 = arith.constant 11 : index
    %c0_53 = arith.constant 0 : index
    %105 = vector.load %arg9[%c11, %c0_53] : memref<16x128xf32, #tpu.memory_space<vmem>>, vector<1x128xf32>
    %106 = vector.broadcast %105 : vector<1x128xf32> to vector<64x128xf32>
    %107 = arith.addf %104, %106 : vector<64x128xf32>
    %cst_54 = arith.constant 0.000000e+00 : f32
    %108 = vector.broadcast %cst_54 : f32 to vector<64x128xf32>
    %109 = arith.subf %108, %107 : vector<64x128xf32>
    %110 = math.exp %109 : vector<64x128xf32>
    %cst_55 = arith.constant 1.000000e+00 : f32
    %111 = vector.broadcast %cst_55 : f32 to vector<64x128xf32>
    %112 = arith.addf %111, %110 : vector<64x128xf32>
    %cst_56 = arith.constant 1.000000e+00 : f32
    %113 = vector.broadcast %cst_56 : f32 to vector<64x128xf32>
    %114 = arith.divf %113, %112 : vector<64x128xf32>
    %c0_57 = arith.constant 0 : index
    %c0_58 = arith.constant 0 : index
    %115 = vector.load %arg11[%c0_57, %c0_58] : memref<64x128xf32, #tpu.memory_space<vmem>>, vector<64x128xf32>
    tpu.vector_store %arg11[%c0_57, %c0_58], %114 {strides = array<i32>} : memref<64x128xf32, #tpu.memory_space<vmem>>, vector<64x128xf32>,
    %116 = vector.extract_strided_slice %31 {offsets = [0, 384], sizes = [64, 128], strides = [1, 1]} : vector<64x512xf32> to vector<64x128xf32>
    %cst_59 = arith.constant 0.000000e+00 : f32
    %117 = vector.broadcast %cst_59 : f32 to vector<64x128xf32>
    %118 = arith.cmpf oge, %116, %117 : vector<64x128xf32>
    %cst_60 = arith.constant 2.000000e-01 : f32
    %119 = vector.broadcast %cst_60 : f32 to vector<64x128xf32>
    %120 = arith.mulf %119, %116 : vector<64x128xf32>
    %121 = arith.select %118, %116, %120 : vector<64x128xi1>, vector<64x128xf32>
    %c7 = arith.constant 7 : index
    %c0_61 = arith.constant 0 : index
    %122 = vector.load %arg9[%c7, %c0_61] : memref<16x128xf32, #tpu.memory_space<vmem>>, vector<1x128xf32>
    %123 = vector.broadcast %122 : vector<1x128xf32> to vector<64x128xf32>
    %124 = arith.mulf %121, %123 : vector<64x128xf32>
    %c8 = arith.constant 8 : index
    %c0_62 = arith.constant 0 : index
    %125 = vector.load %arg9[%c8, %c0_62] : memref<16x128xf32, #tpu.memory_space<vmem>>, vector<1x128xf32>
    %126 = vector.broadcast %125 : vector<1x128xf32> to vector<64x128xf32>
    %127 = arith.addf %124, %126 : vector<64x128xf32>
    %cst_63 = arith.constant dense<0.000000e+00> : vector<64xf32>
    %128 = vector.multi_reduction <add>, %127, %cst_63 [1] : vector<64x128xf32> to vector<64xf32>
    %129 = vector.shape_cast %128 : vector<64xf32> to vector<64x1xf32>
    %130 = tpu.iota {dimensions = array<i32: 1>} : vector<64x128xi32>
    %c64_i32 = arith.constant 64 : i32
    %131 = vector.broadcast %c64_i32 : i32 to vector<64x128xi32>
    %132 = arith.cmpi eq, %130, %131 : vector<64x128xi32>
    %c65_i32 = arith.constant 65 : i32
    %133 = vector.broadcast %c65_i32 : i32 to vector<64x128xi32>
    %134 = arith.cmpi eq, %130, %133 : vector<64x128xi32>
    %135 = vector.shape_cast %129 : vector<64x1xf32> to vector<64x1xf32>
    %136 = vector.broadcast %135 : vector<64x1xf32> to vector<64x128xf32>
    %137 = arith.select %134, %136, %28 : vector<64x128xi1>, vector<64x128xf32>
    %138 = vector.shape_cast %68 : vector<64x1xf32> to vector<64x1xf32>
    %139 = vector.broadcast %138 : vector<64x1xf32> to vector<64x128xf32>
    %140 = arith.select %132, %139, %137 : vector<64x128xi1>, vector<64x128xf32>
    %c0_64 = arith.constant 0 : index
    %c0_65 = arith.constant 0 : index
    %141 = vector.load %arg12[%c0_64, %c0_65] : memref<64x128xf32, #tpu.memory_space<vmem>>, vector<64x128xf32>
    tpu.vector_store %arg12[%c0_64, %c0_65], %140 {strides = array<i32>} : memref<64x128xf32, #tpu.memory_space<vmem>>, vector<64x128xf32>,
    return
  }
  func.func @transform_0(%arg0: i32) -> (i32, i32) {
    %c0_i32 = arith.constant 0 : i32
    %c0_i32_0 = arith.constant 0 : i32
    %c0_i32_1 = arith.constant 0 : i32
    return %c0_i32, %c0_i32_0 : i32, i32
  }
  func.func @transform_1(%arg0: i32) -> (i32, i32) {
    %c0_i32 = arith.constant 0 : i32
    %c0_i32_0 = arith.constant 0 : i32
    %c0_i32_1 = arith.constant 0 : i32
    return %c0_i32, %c0_i32_0 : i32, i32
  }
  func.func @transform_2(%arg0: i32) -> (i32, i32) {
    %c0_i32 = arith.constant 0 : i32
    %c0_i32_0 = arith.constant 0 : i32
    %c0_i32_1 = arith.constant 0 : i32
    return %c0_i32, %c0_i32_0 : i32, i32
  }
  func.func @transform_3(%arg0: i32) -> (i32, i32) {
    %c0_i32 = arith.constant 0 : i32
    %c0_i32_0 = arith.constant 0 : i32
    %c0_i32_1 = arith.constant 0 : i32
    return %c0_i32, %c0_i32_0 : i32, i32
  }
  func.func @transform_4(%arg0: i32) -> (i32, i32) {
    %c0_i32 = arith.constant 0 : i32
    %c0_i32_0 = arith.constant 0 : i32
    %c0_i32_1 = arith.constant 0 : i32
    return %c0_i32, %c0_i32_0 : i32, i32
  }
  func.func @transform_5(%arg0: i32) -> (i32, i32) {
    %c0_i32 = arith.constant 0 : i32
    %c0_i32_0 = arith.constant 0 : i32
    %c0_i32_1 = arith.constant 0 : i32
    return %c0_i32, %c0_i32_0 : i32, i32
  }
  func.func @transform_6(%arg0: i32) -> (i32, i32) {
    %c0_i32 = arith.constant 0 : i32
    %c0_i32_0 = arith.constant 0 : i32
    %c0_i32_1 = arith.constant 0 : i32
    return %c0_i32, %c0_i32_0 : i32, i32
  }
  func.func @transform_7(%arg0: i32) -> (i32, i32) {
    %c0_i32 = arith.constant 0 : i32
    %c0_i32_0 = arith.constant 0 : i32
    %c0_i32_1 = arith.constant 0 : i32
    return %c0_i32, %c0_i32_0 : i32, i32
  }
  func.func @transform_8(%arg0: i32) -> (i32, i32) {
    %c0_i32 = arith.constant 0 : i32
    %c0_i32_0 = arith.constant 0 : i32
    %c0_i32_1 = arith.constant 0 : i32
    return %c0_i32, %c0_i32_0 : i32, i32
  }
  func.func @transform_9(%arg0: i32) -> (i32, i32) {
    %c0_i32 = arith.constant 0 : i32
    %c0_i32_0 = arith.constant 0 : i32
    %c0_i32_1 = arith.constant 0 : i32
    return %c0_i32, %c0_i32_0 : i32, i32
  }
  func.func @transform_10(%arg0: i32) -> (i32, i32) {
    %c0_i32 = arith.constant 0 : i32
    %c0_i32_0 = arith.constant 0 : i32
    %c0_i32_1 = arith.constant 0 : i32
    return %c0_i32, %c0_i32_0 : i32, i32
  }
  func.func @transform_11(%arg0: i32) -> (i32, i32) {
    %c0_i32 = arith.constant 0 : i32
    %c0_i32_0 = arith.constant 0 : i32
    %c0_i32_1 = arith.constant 0 : i32
    return %c0_i32, %c0_i32_0 : i32, i32
  }
}

</mosaic_0001>

<llo_original>
// kernel: fwd.1
$region0: #{fwd.1}
  #allocation0 [shape = 'u32[]', space=smem, size = 0x4, offset = 0x4, fixed_abs, tag = 'smem constant byte address 0x4 - core index']
  #allocation1 [shape = 'u32[144,128]{1,0:T(1,128)}', space=vmem, size = 0x12000, scoped, tag = 'internal scratch']
  %s0 = inlined_call_operand.vmem [shape: bf16[64,64], index: 0, kind: input, shape index: {}]
  %s1 = inlined_call_operand.vmem [shape: bf16[64,128], index: 1, kind: input, shape index: {}]
  %s2 = inlined_call_operand.vmem [shape: bf16[128,128], index: 2, kind: input, shape index: {}]
  %s3 = inlined_call_operand.vmem [shape: bf16[128,128], index: 3, kind: input, shape index: {}]
  %s4 = inlined_call_operand.hbm [shape: bf16[128,128], index: 4, kind: input, shape index: {}]
  %s5 = inlined_call_operand.hbm [shape: bf16[128,512], index: 5, kind: input, shape index: {}]
  %s6 = inlined_call_operand.hbm [shape: bf16[128,128], index: 6, kind: input, shape index: {}]
  %s7 = inlined_call_operand.hbm [shape: bf16[128,128], index: 7, kind: input, shape index: {}]
  %s8 = inlined_call_operand.vmem [shape: f32[16,128], index: 8, kind: input, shape index: {}]
  %s9 = inlined_call_operand.hbm [shape: f32[64,128], index: 9, kind: output, shape index: {0}]
  %s10 = inlined_call_operand.hbm [shape: f32[64,128], index: 10, kind: output, shape index: {1}]
  %s11 = inlined_call_operand.vmem [shape: f32[64,128], index: 11, kind: output, shape index: {2}]
  %12 = xla_tuple %s9, %s10, %s11
  %s13 = sld [smem:[#allocation0]]
  $region78: #{fwd.1} parent=0
    _
  %s15 = ssub.s32 1, %s13
  %s16 = scalar_select 0, %s15, %s13
  $region1: #{fwd.1} parent=0
    #allocation2 [shape = 'u8[32768]{0}', space=vmem, size = 0x8000, scoped, tag = 'input window, operand 4, single buffered']
    #allocation3 [shape = 's32[1]{0}', space=sflag, size = 0x4, scoped, tag = 'scoped memory for fwd.1']
    #allocation4 [shape = 's32[1]{0}', space=sflag, size = 0x4, scoped, tag = 'scoped memory for fwd.1']
    #allocation5 [shape = 'u8[131072]{0}', space=vmem, size = 0x20000, scoped, tag = 'input window, operand 5, single buffered']
    #allocation6 [shape = 's32[1]{0}', space=sflag, size = 0x4, scoped, tag = 'scoped memory for fwd.1']
    #allocation7 [shape = 'u8[32768]{0}', space=vmem, size = 0x8000, scoped, tag = 'input window, operand 6, single buffered']
    #allocation8 [shape = 'u8[32768]{0}', space=vmem, size = 0x8000, scoped, tag = 'input window, operand 7, single buffered']
    #allocation9 [shape = 's32[1]{0}', space=sflag, size = 0x4, scoped, tag = 'scoped memory for fwd.1']
    #allocation10 [shape = 'u8[32768]{0}', space=vmem, size = 0x8000, scoped, tag = 'output window, operand 0, single buffered']
    #allocation11 [shape = 'u8[32768]{0}', space=vmem, size = 0x8000, scoped, tag = 'output window, operand 1, single buffered']
    #allocation12 [shape = 's32[1]{0}', space=sflag, size = 0x4, scoped, tag = 'scoped memory for fwd.1']
    %17 = vsyncpa [#allocation3], 0
    %18 = vsyncpa [#allocation6], 0
    %19 = vsyncpa [#allocation9], 0
    %20 = vsyncpa [#allocation4], 0
    %21 = vsyncpa [#allocation12], 0
    // Predicated region
    $region2: #{fwd.1} parent=1 // pred_check
      _
    $region3: #{fwd.1} parent=1 // pred_check_branch
      %23 = sbr.rel (0) target = $region5
    $region4: #{fwd.1} parent=1 // pred_region
      _
    $region5: #{fwd.1} parent=1 // pred_fallthru
      _
    // Predicated region
    $region6: #{fwd.1} parent=1 // pred_check
      _
    $region7: #{fwd.1} parent=1 // pred_check_branch
      %25 = sbr.rel (0) target = $region9
    $region8: #{fwd.1} parent=1 // pred_region
      _
    $region9: #{fwd.1} parent=1 // pred_fallthru
      _
    // Predicated region
    $region10: #{fwd.1} parent=1 // pred_check
      _
    $region11: #{fwd.1} parent=1 // pred_check_branch
      %27 = sbr.rel (0) target = $region13
    $region12: #{fwd.1} parent=1 // pred_region
      _
    $region13: #{fwd.1} parent=1 // pred_fallthru
      _
    // Predicated region
    $region14: #{fwd.1} parent=1 // pred_check
      _
    $region15: #{fwd.1} parent=1 // pred_check_branch
      %29 = sbr.rel (0) target = $region17
    $region16: #{fwd.1} parent=1 // pred_region
      _
    $region17: #{fwd.1} parent=1 // pred_fallthru
      _
    // Predicated region
    $region18: #{fwd.1} parent=1 // pred_check
      _
    $region19: #{fwd.1} parent=1 // pred_check_branch
      %31 = sbr.rel (0) target = $region21
    $region20: #{fwd.1} parent=1 // pred_region
      %s33 = ssub.s32 1024, 1024
      %34 = vsyncadd [#allocation3], %s33
      %s35 = sshll.u32 [#allocation2], 4
      %s36 = int_to_ptr.vmem [resolvable:$true] %s35
      %41 = dma.hbm_to_vmem [thread:$0]  %s4, 1024, %s36, [#allocation3], 64, 64, 4
    $region21: #{fwd.1} parent=1 // pred_fallthru
      _
    // Predicated region
    $region22: #{fwd.1} parent=1 // pred_check
      _
    $region23: #{fwd.1} parent=1 // pred_check_branch
      %43 = sbr.rel (0) target = $region25
    $region24: #{fwd.1} parent=1 // pred_region
      %s45 = ssub.s32 4096, 4096
      %46 = vsyncadd [#allocation6], %s45
      %s47 = sshll.u32 [#allocation5], 4
      %s48 = int_to_ptr.vmem [resolvable:$true] %s47
      %53 = dma.hbm_to_vmem [thread:$0]  %s5, 4096, %s48, [#allocation6], 256, 256, 16
    $region25: #{fwd.1} parent=1 // pred_fallthru
      _
    // Predicated region
    $region26: #{fwd.1} parent=1 // pred_check
      _
    $region27: #{fwd.1} parent=1 // pred_check_branch
      %55 = sbr.rel (0) target = $region29
    $region28: #{fwd.1} parent=1 // pred_region
      %s57 = ssub.s32 1024, 1024
      %58 = vsyncadd [#allocation6], %s57
      %s59 = sshll.u32 [#allocation7], 4
      %s60 = int_to_ptr.vmem [resolvable:$true] %s59
      %65 = dma.hbm_to_vmem [thread:$0]  %s6, 1024, %s60, [#allocation6], 64, 64, 4
    $region29: #{fwd.1} parent=1 // pred_fallthru
      _
    // Predicated region
    $region30: #{fwd.1} parent=1 // pred_check
      _
    $region31: #{fwd.1} parent=1 // pred_check_branch
      %67 = sbr.rel (0) target = $region33
    $region32: #{fwd.1} parent=1 // pred_region
      %s69 = ssub.s32 1024, 1024
      %70 = vsyncadd [#allocation9], %s69
      %s71 = sshll.u32 [#allocation8], 4
      %s72 = int_to_ptr.vmem [resolvable:$true] %s71
      %77 = dma.hbm_to_vmem [thread:$0]  %s7, 1024, %s72, [#allocation9], 64, 64, 4
    $region33: #{fwd.1} parent=1 // pred_fallthru
      _
    // Predicated region
    $region34: #{fwd.1} parent=1 // pred_check
      _
    $region35: #{fwd.1} parent=1 // pred_check_branch
      %79 = sbr.rel (0) target = $region37
    $region36: #{fwd.1} parent=1 // pred_region
      _
    $region37: #{fwd.1} parent=1 // pred_fallthru
      _
    // Predicated region
    $region38: #{fwd.1} parent=1 // pred_check
      _
    $region39: #{fwd.1} parent=1 // pred_check_branch
      %81 = sbr.rel (0) target = $region41
    $region40: #{fwd.1} parent=1 // pred_region
      %82 = dma.done [#allocation3], 1024
    $region41: #{fwd.1} parent=1 // pred_fallthru
      _
    // Predicated region
    $region42: #{fwd.1} parent=1 // pred_check
      _
    $region43: #{fwd.1} parent=1 // pred_check_branch
      %84 = sbr.rel (0) target = $region45
    $region44: #{fwd.1} parent=1 // pred_region
      %85 = dma.done [#allocation6], 4096
    $region45: #{fwd.1} parent=1 // pred_fallthru
      _
    // Predicated region
    $region46: #{fwd.1} parent=1 // pred_check
      _
    $region47: #{fwd.1} parent=1 // pred_check_branch
      %87 = sbr.rel (0) target = $region49
    $region48: #{fwd.1} parent=1 // pred_region
      %88 = dma.done [#allocation6], 1024
    $region49: #{fwd.1} parent=1 // pred_fallthru
      _
    // Predicated region
    $region50: #{fwd.1} parent=1 // pred_check
      _
    $region51: #{fwd.1} parent=1 // pred_check_branch
      %90 = sbr.rel (0) target = $region53
    $region52: #{fwd.1} parent=1 // pred_region
      %91 = dma.done [#allocation9], 1024
    $region53: #{fwd.1} parent=1 // pred_fallthru
      _
    %v93 = vld [vmem:[%s0] sm:$0xf]
    %v94 = vld [vmem:[%s0 + $0x4] sm:$0xf]
    %v95 = vld [vmem:[%s0 + $0x8] sm:$0xf]
    %v96 = vld [vmem:[%s0 + $0xc] sm:$0xf]
    %v97 = vld [vmem:[%s0 + $0x10] sm:$0xf]
    %v98 = vld [vmem:[%s0 + $0x14] sm:$0xf]
    %v99 = vld [vmem:[%s0 + $0x18] sm:$0xf]
    %v100 = vld [vmem:[%s0 + $0x1c] sm:$0xf]
    %v101 = vld [vmem:[%s1] sm:$0xf]
    %v102 = vld [vmem:[%s1 + $0x4] sm:$0xf]
    %v103 = vld [vmem:[%s1 + $0x8] sm:$0xf]
    %v104 = vld [vmem:[%s1 + $0xc] sm:$0xf]
    %v105 = vld [vmem:[%s1 + $0x10] sm:$0xf]
    %v106 = vld [vmem:[%s1 + $0x14] sm:$0xf]
    %v107 = vld [vmem:[%s1 + $0x18] sm:$0xf]
    %v108 = vld [vmem:[%s1 + $0x1c] sm:$0xf]
    %v109 = vld [vmem:[%s8] sm:$0x1]
    %v110 = vld [vmem:[%s2] sm:$0xf]
    %v111 = vld [vmem:[%s2 + $0x4] sm:$0xf]
    %v112 = vld [vmem:[%s2 + $0x8] sm:$0xf]
    %v113 = vld [vmem:[%s2 + $0xc] sm:$0xf]
    %v114 = vld [vmem:[%s2 + $0x10] sm:$0xf]
    %v115 = vld [vmem:[%s2 + $0x14] sm:$0xf]
    %v116 = vld [vmem:[%s2 + $0x18] sm:$0xf]
    %v117 = vld [vmem:[%s2 + $0x1c] sm:$0xf]
    %v118 = vld [vmem:[%s2 + $0x20] sm:$0xf]
    %v119 = vld [vmem:[%s2 + $0x24] sm:$0xf]
    %v120 = vld [vmem:[%s2 + $0x28] sm:$0xf]
    %v121 = vld [vmem:[%s2 + $0x2c] sm:$0xf]
    %v122 = vld [vmem:[%s2 + $0x30] sm:$0xf]
    %v123 = vld [vmem:[%s2 + $0x34] sm:$0xf]
    %v124 = vld [vmem:[%s2 + $0x38] sm:$0xf]
    %v125 = vld [vmem:[%s2 + $0x3c] sm:$0xf]
    %v134 = vunpack.c.l.b16 %v101
    %v135 = vunpack.c.l.b16 %v102
    %v136 = vunpack.c.l.b16 %v103
    %v137 = vunpack.c.l.b16 %v104
    %v138 = vunpack.c.l.b16 %v105
    %v139 = vunpack.c.l.b16 %v106
    %v140 = vunpack.c.l.b16 %v107
    %v141 = vunpack.c.l.b16 %v108
    %v142 = vpack.c.b16 %v135, %v134
    %v143 = vpack.c.b16 %v137, %v136
    %v144 = vpack.c.b16 %v139, %v138
    %v145 = vpack.c.b16 %v141, %v140
    %v166 = vunpack.c.l.b16 %v110
    %v167 = vunpack.c.l.b16 %v111
    %v168 = vunpack.c.l.b16 %v112
    %v169 = vunpack.c.l.b16 %v113
    %v170 = vunpack.c.l.b16 %v114
    %v171 = vunpack.c.l.b16 %v115
    %v172 = vunpack.c.l.b16 %v116
    %v173 = vunpack.c.l.b16 %v117
    %v174 = vunpack.c.l.b16 %v118
    %v175 = vunpack.c.l.b16 %v119
    %v176 = vunpack.c.l.b16 %v120
    %v177 = vunpack.c.l.b16 %v121
    %v178 = vunpack.c.l.b16 %v122
    %v179 = vunpack.c.l.b16 %v123
    %v180 = vunpack.c.l.b16 %v124
    %v181 = vunpack.c.l.b16 %v125
    %v182 = vpack.c.b16 %v167, %v166
    %v183 = vpack.c.b16 %v169, %v168
    %v184 = vpack.c.b16 %v171, %v170
    %v185 = vpack.c.b16 %v173, %v172
    %v186 = vpack.c.b16 %v175, %v174
    %v187 = vpack.c.b16 %v177, %v176
    %v188 = vpack.c.b16 %v179, %v178
    %v189 = vpack.c.b16 %v181, %v180
    %198 = vmatprep.subr.bf16.mxu0 0
    %199 = vmatpush1.bf16.msra.mxu0 %v182
    %200 = vmatprep.subr.bf16.mxu0 0
    %201 = vmatpush1.bf16.msra.mxu0 %v183
    %202 = vmatprep.subr.bf16.mxu0 0
    %203 = vmatpush1.bf16.msra.mxu0 %v184
    %204 = vmatprep.subr.bf16.mxu0 0
    %205 = vmatpush1.bf16.msra.mxu0 %v185
    %206 = vmatprep.subr.bf16.mxu0 0
    %207 = vmatpush1.bf16.msra.mxu0 %v186
    %208 = vmatprep.subr.bf16.mxu0 0
    %209 = vmatpush1.bf16.msra.mxu0 %v187
    %210 = vmatprep.subr.bf16.mxu0 0
    %211 = vmatpush1.bf16.msra.mxu0 %v188
    %212 = vmatprep.subr.bf16.mxu0 0
    %213 = vmatpush1.bf16.msra.mxu0 %v189
    %214 = vmatprep.subr.bf16.mxu0 0
    %215 = vmatpush1.bf16.msra.mxu0 0
    %216 = vmatprep.subr.bf16.mxu0 0
    %217 = vmatpush1.bf16.msra.mxu0 0
    %218 = vmatprep.subr.bf16.mxu0 0
    %219 = vmatpush1.bf16.msra.mxu0 0
    %220 = vmatprep.subr.bf16.mxu0 0
    %221 = vmatpush1.bf16.msra.mxu0 0
    %222 = vmatprep.subr.bf16.mxu0 0
    %223 = vmatpush1.bf16.msra.mxu0 0
    %224 = vmatprep.subr.bf16.mxu0 0
    %225 = vmatpush1.bf16.msra.mxu0 0
    %226 = vmatprep.subr.bf16.mxu0 0
    %227 = vmatpush1.bf16.msra.mxu0 0
    %228 = vmatprep.subr.bf16.mxu0 0
    %229 = vmatpush1.bf16.msra.mxu0 0
    %230 = vmatprep.mubr.bf16.mxu0 0
    %231 = vmatmul.mubr.bf16.gmra.mrb[0].mxu0 %v142
    %v232 = vpop.f32.mrb[0].mxu0
    %v233 = vadd.f32 0.0, %v232
    %v234 = vpop.f32.mrb[0].mxu0
    %v235 = vpop.f32.mrb[0].mxu0
    %v236 = vadd.f32 0.0, %v235
    %v237 = vpop.f32.mrb[0].mxu0
    %238 = vmatprep.mubr.bf16.mxu0 0
    %239 = vmatmul.mubr.bf16.gmra.mrb[0].mxu0 %v143
    %v240 = vpop.f32.mrb[0].mxu0
    %v241 = vadd.f32 0.0, %v240
    %v242 = vpop.f32.mrb[0].mxu0
    %v243 = vpop.f32.mrb[0].mxu0
    %v244 = vadd.f32 0.0, %v243
    %v245 = vpop.f32.mrb[0].mxu0
    %246 = vmatprep.mubr.bf16.mxu0 0
    %247 = vmatmul.mubr.bf16.gmra.mrb[0].mxu0 %v144
    %v248 = vpop.f32.mrb[0].mxu0
    %v249 = vadd.f32 0.0, %v248
    %v250 = vpop.f32.mrb[0].mxu0
    %v251 = vpop.f32.mrb[0].mxu0
    %v252 = vadd.f32 0.0, %v251
    %v253 = vpop.f32.mrb[0].mxu0
    %254 = vmatprep.mubr.bf16.mxu0 0
    %255 = vmatmul.mubr.bf16.gmra.mrb[0].mxu0 %v145
    %v256 = vpop.f32.mrb[0].mxu0
    %v257 = vadd.f32 0.0, %v256
    %v258 = vpop.f32.mrb[0].mxu0
    %v259 = vpop.f32.mrb[0].mxu0
    %v260 = vadd.f32 0.0, %v259
    %v261 = vpop.f32.mrb[0].mxu0
    %262 = vdwg.mxu0
    %v263 = vpack.c.bf16 %v236, %v233
    %v264 = vpack.c.bf16 %v244, %v241
    %v265 = vpack.c.bf16 %v252, %v249
    %v266 = vpack.c.bf16 %v260, %v257
    %v267 = vlaneseq
    %v268 = vshrl.u32 %v267, 7
    %v269 = vsub.s32 0, %v268
    %v270 = vrot.slane %v109, %v269
    %v279 = vunpack.c.l.b16 %v93
    %v280 = vunpack.c.l.b16 %v94
    %v281 = vunpack.c.l.b16 %v95
    %v282 = vunpack.c.l.b16 %v96
    %v283 = vunpack.c.l.b16 %v97
    %v284 = vunpack.c.l.b16 %v98
    %v285 = vunpack.c.l.b16 %v99
    %v286 = vunpack.c.l.b16 %v100
    %v287 = vpack.c.b16 %v280, %v279
    %v288 = vpack.c.b16 %v282, %v281
    %v289 = vpack.c.b16 %v284, %v283
    %v290 = vpack.c.b16 %v286, %v285
    %vm291 = vcmask 523264
    %v293 = vsel %vm291, %v287, 0
    %v296 = vsel %vm291, %v288, 0
    %v299 = vsel %vm291, %v289, 0
    %v302 = vsel %vm291, %v290, 0
    %304 = vmatprep.subr.bf16.mxu0 0
    %305 = vmatpush1.bf16.msra.mxu0 %v263
    %306 = vmatprep.subr.bf16.mxu0 0
    %307 = vmatpush1.bf16.msra.mxu0 %v264
    %308 = vmatprep.subr.bf16.mxu0 0
    %309 = vmatpush1.bf16.msra.mxu0 %v265
    %310 = vmatprep.subr.bf16.mxu0 0
    %311 = vmatpush1.bf16.msra.mxu0 %v266
    %312 = vmatprep.subr.bf16.mxu0 0
    %313 = vmatpush1.bf16.msra.mxu0 0
    %314 = vmatprep.subr.bf16.mxu0 0
    %315 = vmatpush1.bf16.msra.mxu0 0
    %316 = vmatprep.subr.bf16.mxu0 0
    %317 = vmatpush1.bf16.msra.mxu0 0
    %318 = vmatprep.subr.bf16.mxu0 0
    %319 = vmatpush1.bf16.msra.mxu0 0
    %320 = vmatprep.subr.bf16.mxu0 0
    %321 = vmatpush1.bf16.msra.mxu0 0
    %322 = vmatprep.subr.bf16.mxu0 0
    %323 = vmatpush1.bf16.msra.mxu0 0
    %324 = vmatprep.subr.bf16.mxu0 0
    %325 = vmatpush1.bf16.msra.mxu0 0
    %326 = vmatprep.subr.bf16.mxu0 0
    %327 = vmatpush1.bf16.msra.mxu0 0
    %328 = vmatprep.subr.bf16.mxu0 0
    %329 = vmatpush1.bf16.msra.mxu0 0
    %330 = vmatprep.subr.bf16.mxu0 0
    %331 = vmatpush1.bf16.msra.mxu0 0
    %332 = vmatprep.subr.bf16.mxu0 0
    %333 = vmatpush1.bf16.msra.mxu0 0
    %334 = vmatprep.subr.bf16.mxu0 0
    %335 = vmatpush1.bf16.msra.mxu0 0
    %336 = vmatprep.mubr.bf16.mxu0 0
    %337 = vmatmul.mubr.bf16.gmra.mrb[0].mxu0 %v293
    %v338 = vpop.f32.mrb[0].mxu0
    %v339 = vadd.f32 %v270, %v338
    %v340 = vpop.f32.mrb[0].mxu0
    %v341 = vpop.f32.mrb[0].mxu0
    %v342 = vadd.f32 %v270, %v341
    %v343 = vpop.f32.mrb[0].mxu0
    %344 = vmatprep.mubr.bf16.mxu0 0
    %345 = vmatmul.mubr.bf16.gmra.mrb[0].mxu0 %v296
    %v346 = vpop.f32.mrb[0].mxu0
    %v347 = vadd.f32 %v270, %v346
    %v348 = vpop.f32.mrb[0].mxu0
    %v349 = vpop.f32.mrb[0].mxu0
    %v350 = vadd.f32 %v270, %v349
    %v351 = vpop.f32.mrb[0].mxu0
    %352 = vmatprep.mubr.bf16.mxu0 0
    %353 = vmatmul.mubr.bf16.gmra.mrb[0].mxu0 %v299
    %v354 = vpop.f32.mrb[0].mxu0
    %v355 = vadd.f32 %v270, %v354
    %v356 = vpop.f32.mrb[0].mxu0
    %v357 = vpop.f32.mrb[0].mxu0
    %v358 = vadd.f32 %v270, %v357
    %v359 = vpop.f32.mrb[0].mxu0
    %360 = vmatprep.mubr.bf16.mxu0 0
    %361 = vmatmul.mubr.bf16.gmra.mrb[0].mxu0 %v302
    %v362 = vpop.f32.mrb[0].mxu0
    %v363 = vadd.f32 %v270, %v362
    %v364 = vpop.f32.mrb[0].mxu0
    %v365 = vpop.f32.mrb[0].mxu0
    %v366 = vadd.f32 %v270, %v365
    %v367 = vpop.f32.mrb[0].mxu0
    %368 = vdwg.mxu0
    %v369 = vmax.f32 %v339, 0.0
    %v370 = vmax.f32 %v342, 0.0
    %v371 = vmax.f32 %v347, 0.0
    %v372 = vmax.f32 %v350, 0.0
    %v373 = vmax.f32 %v355, 0.0
    %v374 = vmax.f32 %v358, 0.0
    %v375 = vmax.f32 %v363, 0.0
    %v376 = vmax.f32 %v366, 0.0
    %v377 = vpack.c.bf16 %v370, %v369
    %v378 = vpack.c.bf16 %v372, %v371
    %v379 = vpack.c.bf16 %v374, %v373
    %v380 = vpack.c.bf16 %v376, %v375
    %v381 = vld [vmem:[%s8 + $0x1] sm:$0x1]
    %v382 = vld [vmem:[%s3] sm:$0xf]
    %v383 = vld [vmem:[%s3 + $0x4] sm:$0xf]
    %v384 = vld [vmem:[%s3 + $0x8] sm:$0xf]
    %v385 = vld [vmem:[%s3 + $0xc] sm:$0xf]
    %v386 = vld [vmem:[%s3 + $0x10] sm:$0xf]
    %v387 = vld [vmem:[%s3 + $0x14] sm:$0xf]
    %v388 = vld [vmem:[%s3 + $0x18] sm:$0xf]
    %v389 = vld [vmem:[%s3 + $0x1c] sm:$0xf]
    %v390 = vld [vmem:[%s3 + $0x20] sm:$0xf]
    %v391 = vld [vmem:[%s3 + $0x24] sm:$0xf]
    %v392 = vld [vmem:[%s3 + $0x28] sm:$0xf]
    %v393 = vld [vmem:[%s3 + $0x2c] sm:$0xf]
    %v394 = vld [vmem:[%s3 + $0x30] sm:$0xf]
    %v395 = vld [vmem:[%s3 + $0x34] sm:$0xf]
    %v396 = vld [vmem:[%s3 + $0x38] sm:$0xf]
    %v397 = vld [vmem:[%s3 + $0x3c] sm:$0xf]
    %v414 = vunpack.c.l.b16 %v382
    %v415 = vunpack.c.l.b16 %v383
    %v416 = vunpack.c.l.b16 %v384
    %v417 = vunpack.c.l.b16 %v385
    %v418 = vunpack.c.l.b16 %v386
    %v419 = vunpack.c.l.b16 %v387
    %v420 = vunpack.c.l.b16 %v388
    %v421 = vunpack.c.l.b16 %v389
    %v422 = vunpack.c.l.b16 %v390
    %v423 = vunpack.c.l.b16 %v391
    %v424 = vunpack.c.l.b16 %v392
    %v425 = vunpack.c.l.b16 %v393
    %v426 = vunpack.c.l.b16 %v394
    %v427 = vunpack.c.l.b16 %v395
    %v428 = vunpack.c.l.b16 %v396
    %v429 = vunpack.c.l.b16 %v397
    %v430 = vpack.c.b16 %v415, %v414
    %v431 = vpack.c.b16 %v417, %v416
    %v432 = vpack.c.b16 %v419, %v418
    %v433 = vpack.c.b16 %v421, %v420
    %v434 = vpack.c.b16 %v423, %v422
    %v435 = vpack.c.b16 %v425, %v424
    %v436 = vpack.c.b16 %v427, %v426
    %v437 = vpack.c.b16 %v429, %v428
    %446 = vmatprep.subr.bf16.mxu0 0
    %447 = vmatpush1.bf16.msra.mxu0 %v430
    %448 = vmatprep.subr.bf16.mxu0 0
    %449 = vmatpush1.bf16.msra.mxu0 %v431
    %450 = vmatprep.subr.bf16.mxu0 0
    %451 = vmatpush1.bf16.msra.mxu0 %v432
    %452 = vmatprep.subr.bf16.mxu0 0
    %453 = vmatpush1.bf16.msra.mxu0 %v433
    %454 = vmatprep.subr.bf16.mxu0 0
    %455 = vmatpush1.bf16.msra.mxu0 %v434
    %456 = vmatprep.subr.bf16.mxu0 0
    %457 = vmatpush1.bf16.msra.mxu0 %v435
    %458 = vmatprep.subr.bf16.mxu0 0
    %459 = vmatpush1.bf16.msra.mxu0 %v436
    %460 = vmatprep.subr.bf16.mxu0 0
    %461 = vmatpush1.bf16.msra.mxu0 %v437
    %462 = vmatprep.subr.bf16.mxu0 0
    %463 = vmatpush1.bf16.msra.mxu0 0
    %464 = vmatprep.subr.bf16.mxu0 0
    %465 = vmatpush1.bf16.msra.mxu0 0
    %466 = vmatprep.subr.bf16.mxu0 0
    %467 = vmatpush1.bf16.msra.mxu0 0
    %468 = vmatprep.subr.bf16.mxu0 0
    %469 = vmatpush1.bf16.msra.mxu0 0
    %470 = vmatprep.subr.bf16.mxu0 0
    %471 = vmatpush1.bf16.msra.mxu0 0
    %472 = vmatprep.subr.bf16.mxu0 0
    %473 = vmatpush1.bf16.msra.mxu0 0
    %474 = vmatprep.subr.bf16.mxu0 0
    %475 = vmatpush1.bf16.msra.mxu0 0
    %476 = vmatprep.subr.bf16.mxu0 0
    %477 = vmatpush1.bf16.msra.mxu0 0
    %478 = vmatprep.mubr.bf16.mxu0 0
    %479 = vmatmul.mubr.bf16.gmra.mrb[0].mxu0 %v377
    %v480 = vpop.f32.mrb[0].mxu0
    %v481 = vadd.f32 0.0, %v480
    %v482 = vpop.f32.mrb[0].mxu0
    %v483 = vpop.f32.mrb[0].mxu0
    %v484 = vadd.f32 0.0, %v483
    %v485 = vpop.f32.mrb[0].mxu0
    %486 = vmatprep.mubr.bf16.mxu0 0
    %487 = vmatmul.mubr.bf16.gmra.mrb[0].mxu0 %v378
    %v488 = vpop.f32.mrb[0].mxu0
    %v489 = vadd.f32 0.0, %v488
    %v490 = vpop.f32.mrb[0].mxu0
    %v491 = vpop.f32.mrb[0].mxu0
    %v492 = vadd.f32 0.0, %v491
    %v493 = vpop.f32.mrb[0].mxu0
    %494 = vmatprep.mubr.bf16.mxu0 0
    %495 = vmatmul.mubr.bf16.gmra.mrb[0].mxu0 %v379
    %v496 = vpop.f32.mrb[0].mxu0
    %v497 = vadd.f32 0.0, %v496
    %v498 = vpop.f32.mrb[0].mxu0
    %v499 = vpop.f32.mrb[0].mxu0
    %v500 = vadd.f32 0.0, %v499
    %v501 = vpop.f32.mrb[0].mxu0
    %502 = vmatprep.mubr.bf16.mxu0 0
    %503 = vmatmul.mubr.bf16.gmra.mrb[0].mxu0 %v380
    %v504 = vpop.f32.mrb[0].mxu0
    %v505 = vadd.f32 0.0, %v504
    %v506 = vpop.f32.mrb[0].mxu0
    %v507 = vpop.f32.mrb[0].mxu0
    %v508 = vadd.f32 0.0, %v507
    %v509 = vpop.f32.mrb[0].mxu0
    %510 = vdwg.mxu0
    %v511 = vpack.c.bf16 %v484, %v481
    %v512 = vpack.c.bf16 %v492, %v489
    %v513 = vpack.c.bf16 %v500, %v497
    %v514 = vpack.c.bf16 %v508, %v505
    %v515 = vlaneseq
    %v516 = vshrl.u32 %v515, 7
    %v517 = vsub.s32 0, %v516
    %v518 = vrot.slane %v381, %v517
    %519 = vmatprep.subr.bf16.mxu0 0
    %520 = vmatpush1.bf16.msra.mxu0 %v511
    %521 = vmatprep.subr.bf16.mxu0 0
    %522 = vmatpush1.bf16.msra.mxu0 %v512
    %523 = vmatprep.subr.bf16.mxu0 0
    %524 = vmatpush1.bf16.msra.mxu0 %v513
    %525 = vmatprep.subr.bf16.mxu0 0
    %526 = vmatpush1.bf16.msra.mxu0 %v514
    %527 = vmatprep.subr.bf16.mxu0 0
    %528 = vmatpush1.bf16.msra.mxu0 0
    %529 = vmatprep.subr.bf16.mxu0 0
    %530 = vmatpush1.bf16.msra.mxu0 0
    %531 = vmatprep.subr.bf16.mxu0 0
    %532 = vmatpush1.bf16.msra.mxu0 0
    %533 = vmatprep.subr.bf16.mxu0 0
    %534 = vmatpush1.bf16.msra.mxu0 0
    %535 = vmatprep.subr.bf16.mxu0 0
    %536 = vmatpush1.bf16.msra.mxu0 0
    %537 = vmatprep.subr.bf16.mxu0 0
    %538 = vmatpush1.bf16.msra.mxu0 0
    %539 = vmatprep.subr.bf16.mxu0 0
    %540 = vmatpush1.bf16.msra.mxu0 0
    %541 = vmatprep.subr.bf16.mxu0 0
    %542 = vmatpush1.bf16.msra.mxu0 0
    %543 = vmatprep.subr.bf16.mxu0 0
    %544 = vmatpush1.bf16.msra.mxu0 0
    %545 = vmatprep.subr.bf16.mxu0 0
    %546 = vmatpush1.bf16.msra.mxu0 0
    %547 = vmatprep.subr.bf16.mxu0 0
    %548 = vmatpush1.bf16.msra.mxu0 0
    %549 = vmatprep.subr.bf16.mxu0 0
    %550 = vmatpush1.bf16.msra.mxu0 0
    %551 = vmatprep.mubr.bf16.mxu0 0
    %552 = vmatmul.mubr.bf16.gmra.mrb[0].mxu0 %v293
    %v553 = vpop.f32.mrb[0].mxu0
    %v554 = vadd.f32 %v518, %v553
    %v555 = vpop.f32.mrb[0].mxu0
    %v556 = vpop.f32.mrb[0].mxu0
    %v557 = vadd.f32 %v518, %v556
    %v558 = vpop.f32.mrb[0].mxu0
    %559 = vmatprep.mubr.bf16.mxu0 0
    %560 = vmatmul.mubr.bf16.gmra.mrb[0].mxu0 %v296
    %v561 = vpop.f32.mrb[0].mxu0
    %v562 = vadd.f32 %v518, %v561
    %v563 = vpop.f32.mrb[0].mxu0
    %v564 = vpop.f32.mrb[0].mxu0
    %v565 = vadd.f32 %v518, %v564
    %v566 = vpop.f32.mrb[0].mxu0
    %567 = vmatprep.mubr.bf16.mxu0 0
    %568 = vmatmul.mubr.bf16.gmra.mrb[0].mxu0 %v299
    %v569 = vpop.f32.mrb[0].mxu0
    %v570 = vadd.f32 %v518, %v569
    %v571 = vpop.f32.mrb[0].mxu0
    %v572 = vpop.f32.mrb[0].mxu0
    %v573 = vadd.f32 %v518, %v572
    %v574 = vpop.f32.mrb[0].mxu0
    %575 = vmatprep.mubr.bf16.mxu0 0
    %576 = vmatmul.mubr.bf16.gmra.mrb[0].mxu0 %v302
    %v577 = vpop.f32.mrb[0].mxu0
    %v578 = vadd.f32 %v518, %v577
    %v579 = vpop.f32.mrb[0].mxu0
    %v580 = vpop.f32.mrb[0].mxu0
    %v581 = vadd.f32 %v518, %v580
    %v582 = vpop.f32.mrb[0].mxu0
    %583 = vdwg.mxu0
    %v584 = vmax.f32 %v554, 0.0
    %v585 = vmax.f32 %v557, 0.0
    %v586 = vmax.f32 %v562, 0.0
    %v587 = vmax.f32 %v565, 0.0
    %v588 = vmax.f32 %v570, 0.0
    %v589 = vmax.f32 %v573, 0.0
    %v590 = vmax.f32 %v578, 0.0
    %v591 = vmax.f32 %v581, 0.0
    %v592 = vpack.c.bf16 %v585, %v584
    %v593 = vpack.c.bf16 %v587, %v586
    %v594 = vpack.c.bf16 %v589, %v588
    %v595 = vpack.c.bf16 %v591, %v590
    %v596 = vld [vmem:[%s8 + $0x2] sm:$0x1]
    %v597 = vld [vmem:[#allocation2] sm:$0xf]
    %v598 = vld [vmem:[#allocation2 + $0x4] sm:$0xf]
    %v599 = vld [vmem:[#allocation2 + $0x8] sm:$0xf]
    %v600 = vld [vmem:[#allocation2 + $0xc] sm:$0xf]
    %v601 = vld [vmem:[#allocation2 + $0x10] sm:$0xf]
    %v602 = vld [vmem:[#allocation2 + $0x14] sm:$0xf]
    %v603 = vld [vmem:[#allocation2 + $0x18] sm:$0xf]
    %v604 = vld [vmem:[#allocation2 + $0x1c] sm:$0xf]
    %v605 = vld [vmem:[#allocation2 + $0x20] sm:$0xf]
    %v606 = vld [vmem:[#allocation2 + $0x24] sm:$0xf]
    %v607 = vld [vmem:[#allocation2 + $0x28] sm:$0xf]
    %v608 = vld [vmem:[#allocation2 + $0x2c] sm:$0xf]
    %v609 = vld [vmem:[#allocation2 + $0x30] sm:$0xf]
    %v610 = vld [vmem:[#allocation2 + $0x34] sm:$0xf]
    %v611 = vld [vmem:[#allocation2 + $0x38] sm:$0xf]
    %v612 = vld [vmem:[#allocation2 + $0x3c] sm:$0xf]
    %v629 = vunpack.c.l.b16 %v597
    %v630 = vunpack.c.l.b16 %v598
    %v631 = vunpack.c.l.b16 %v599
    %v632 = vunpack.c.l.b16 %v600
    %v633 = vunpack.c.l.b16 %v601
    %v634 = vunpack.c.l.b16 %v602
    %v635 = vunpack.c.l.b16 %v603
    %v636 = vunpack.c.l.b16 %v604
    %v637 = vunpack.c.l.b16 %v605
    %v638 = vunpack.c.l.b16 %v606
    %v639 = vunpack.c.l.b16 %v607
    %v640 = vunpack.c.l.b16 %v608
    %v641 = vunpack.c.l.b16 %v609
    %v642 = vunpack.c.l.b16 %v610
    %v643 = vunpack.c.l.b16 %v611
    %v644 = vunpack.c.l.b16 %v612
    %v645 = vpack.c.b16 %v630, %v629
    %v646 = vpack.c.b16 %v632, %v631
    %v647 = vpack.c.b16 %v634, %v633
    %v648 = vpack.c.b16 %v636, %v635
    %v649 = vpack.c.b16 %v638, %v637
    %v650 = vpack.c.b16 %v640, %v639
    %v651 = vpack.c.b16 %v642, %v641
    %v652 = vpack.c.b16 %v644, %v643
    %661 = vmatprep.subr.bf16.mxu0 0
    %662 = vmatpush1.bf16.msra.mxu0 %v645
    %663 = vmatprep.subr.bf16.mxu0 0
    %664 = vmatpush1.bf16.msra.mxu0 %v646
    %665 = vmatprep.subr.bf16.mxu0 0
    %666 = vmatpush1.bf16.msra.mxu0 %v647
    %667 = vmatprep.subr.bf16.mxu0 0
    %668 = vmatpush1.bf16.msra.mxu0 %v648
    %669 = vmatprep.subr.bf16.mxu0 0
    %670 = vmatpush1.bf16.msra.mxu0 %v649
    %671 = vmatprep.subr.bf16.mxu0 0
    %672 = vmatpush1.bf16.msra.mxu0 %v650
    %673 = vmatprep.subr.bf16.mxu0 0
    %674 = vmatpush1.bf16.msra.mxu0 %v651
    %675 = vmatprep.subr.bf16.mxu0 0
    %676 = vmatpush1.bf16.msra.mxu0 %v652
    %677 = vmatprep.subr.bf16.mxu0 0
    %678 = vmatpush1.bf16.msra.mxu0 0
    %679 = vmatprep.subr.bf16.mxu0 0
    %680 = vmatpush1.bf16.msra.mxu0 0
    %681 = vmatprep.subr.bf16.mxu0 0
    %682 = vmatpush1.bf16.msra.mxu0 0
    %683 = vmatprep.subr.bf16.mxu0 0
    %684 = vmatpush1.bf16.msra.mxu0 0
    %685 = vmatprep.subr.bf16.mxu0 0
    %686 = vmatpush1.bf16.msra.mxu0 0
    %687 = vmatprep.subr.bf16.mxu0 0
    %688 = vmatpush1.bf16.msra.mxu0 0
    %689 = vmatprep.subr.bf16.mxu0 0
    %690 = vmatpush1.bf16.msra.mxu0 0
    %691 = vmatprep.subr.bf16.mxu0 0
    %692 = vmatpush1.bf16.msra.mxu0 0
    %693 = vmatprep.mubr.bf16.mxu0 0
    %694 = vmatmul.mubr.bf16.gmra.mrb[0].mxu0 %v592
    %v695 = vpop.f32.mrb[0].mxu0
    %v696 = vadd.f32 0.0, %v695
    %v697 = vpop.f32.mrb[0].mxu0
    %v698 = vpop.f32.mrb[0].mxu0
    %v699 = vadd.f32 0.0, %v698
    %v700 = vpop.f32.mrb[0].mxu0
    %701 = vmatprep.mubr.bf16.mxu0 0
    %702 = vmatmul.mubr.bf16.gmra.mrb[0].mxu0 %v593
    %v703 = vpop.f32.mrb[0].mxu0
    %v704 = vadd.f32 0.0, %v703
    %v705 = vpop.f32.mrb[0].mxu0
    %v706 = vpop.f32.mrb[0].mxu0
    %v707 = vadd.f32 0.0, %v706
    %v708 = vpop.f32.mrb[0].mxu0
    %709 = vmatprep.mubr.bf16.mxu0 0
    %710 = vmatmul.mubr.bf16.gmra.mrb[0].mxu0 %v594
    %v711 = vpop.f32.mrb[0].mxu0
    %v712 = vadd.f32 0.0, %v711
    %v713 = vpop.f32.mrb[0].mxu0
    %v714 = vpop.f32.mrb[0].mxu0
    %v715 = vadd.f32 0.0, %v714
    %v716 = vpop.f32.mrb[0].mxu0
    %717 = vmatprep.mubr.bf16.mxu0 0
    %718 = vmatmul.mubr.bf16.gmra.mrb[0].mxu0 %v595
    %v719 = vpop.f32.mrb[0].mxu0
    %v720 = vadd.f32 0.0, %v719
    %v721 = vpop.f32.mrb[0].mxu0
    %v722 = vpop.f32.mrb[0].mxu0
    %v723 = vadd.f32 0.0, %v722
    %v724 = vpop.f32.mrb[0].mxu0
    %725 = vdwg.mxu0
    %v726 = vpack.c.bf16 %v699, %v696
    %v727 = vpack.c.bf16 %v707, %v704
    %v728 = vpack.c.bf16 %v715, %v712
    %v729 = vpack.c.bf16 %v723, %v720
    %v730 = vlaneseq
    %v731 = vshrl.u32 %v730, 7
    %v732 = vsub.s32 0, %v731
    %v733 = vrot.slane %v596, %v732
    %734 = vmatprep.subr.bf16.mxu0 0
    %735 = vmatpush1.bf16.msra.mxu0 %v726
    %736 = vmatprep.subr.bf16.mxu0 0
    %737 = vmatpush1.bf16.msra.mxu0 %v727
    %738 = vmatprep.subr.bf16.mxu0 0
    %739 = vmatpush1.bf16.msra.mxu0 %v728
    %740 = vmatprep.subr.bf16.mxu0 0
    %741 = vmatpush1.bf16.msra.mxu0 %v729
    %742 = vmatprep.subr.bf16.mxu0 0
    %743 = vmatpush1.bf16.msra.mxu0 0
    %744 = vmatprep.subr.bf16.mxu0 0
    %745 = vmatpush1.bf16.msra.mxu0 0
    %746 = vmatprep.subr.bf16.mxu0 0
    %747 = vmatpush1.bf16.msra.mxu0 0
    %748 = vmatprep.subr.bf16.mxu0 0
    %749 = vmatpush1.bf16.msra.mxu0 0
    %750 = vmatprep.subr.bf16.mxu0 0
    %751 = vmatpush1.bf16.msra.mxu0 0
    %752 = vmatprep.subr.bf16.mxu0 0
    %753 = vmatpush1.bf16.msra.mxu0 0
    %754 = vmatprep.subr.bf16.mxu0 0
    %755 = vmatpush1.bf16.msra.mxu0 0
    %756 = vmatprep.subr.bf16.mxu0 0
    %757 = vmatpush1.bf16.msra.mxu0 0
    %758 = vmatprep.subr.bf16.mxu0 0
    %759 = vmatpush1.bf16.msra.mxu0 0
    %760 = vmatprep.subr.bf16.mxu0 0
    %761 = vmatpush1.bf16.msra.mxu0 0
    %762 = vmatprep.subr.bf16.mxu0 0
    %763 = vmatpush1.bf16.msra.mxu0 0
    %764 = vmatprep.subr.bf16.mxu0 0
    %765 = vmatpush1.bf16.msra.mxu0 0
    %766 = vmatprep.mubr.bf16.mxu0 0
    %767 = vmatmul.mubr.bf16.gmra.mrb[0].mxu0 %v293
    %v768 = vpop.f32.mrb[0].mxu0
    %v769 = vadd.f32 %v733, %v768
    %v770 = vpop.f32.mrb[0].mxu0
    %v771 = vpop.f32.mrb[0].mxu0
    %v772 = vadd.f32 %v733, %v771
    %v773 = vpop.f32.mrb[0].mxu0
    %774 = vmatprep.mubr.bf16.mxu0 0
    %775 = vmatmul.mubr.bf16.gmra.mrb[0].mxu0 %v296
    %v776 = vpop.f32.mrb[0].mxu0
    %v777 = vadd.f32 %v733, %v776
    %v778 = vpop.f32.mrb[0].mxu0
    %v779 = vpop.f32.mrb[0].mxu0
    %v780 = vadd.f32 %v733, %v779
    %v781 = vpop.f32.mrb[0].mxu0
    %782 = vmatprep.mubr.bf16.mxu0 0
    %783 = vmatmul.mubr.bf16.gmra.mrb[0].mxu0 %v299
    %v784 = vpop.f32.mrb[0].mxu0
    %v785 = vadd.f32 %v733, %v784
    %v786 = vpop.f32.mrb[0].mxu0
    %v787 = vpop.f32.mrb[0].mxu0
    %v788 = vadd.f32 %v733, %v787
    %v789 = vpop.f32.mrb[0].mxu0
    %790 = vmatprep.mubr.bf16.mxu0 0
    %791 = vmatmul.mubr.bf16.gmra.mrb[0].mxu0 %v302
    %v792 = vpop.f32.mrb[0].mxu0
    %v793 = vadd.f32 %v733, %v792
    %v794 = vpop.f32.mrb[0].mxu0
    %v795 = vpop.f32.mrb[0].mxu0
    %v796 = vadd.f32 %v733, %v795
    %v797 = vpop.f32.mrb[0].mxu0
    %798 = vdwg.mxu0
    %v799 = vpack.c.bf16 %v772, %v769
    %v800 = vpack.c.bf16 %v780, %v777
    %v801 = vpack.c.bf16 %v788, %v785
    %v802 = vpack.c.bf16 %v796, %v793
    %v803 = vld [vmem:[#allocation5] sm:$0xff]
    %v804 = vld [vmem:[#allocation5 + $0x8] sm:$0xff]
    %v805 = vld [vmem:[#allocation5 + $0x10] sm:$0xff]
    %v806 = vld [vmem:[#allocation5 + $0x18] sm:$0xff]
    %v807 = vld [vmem:[#allocation5 + $0x20] sm:$0xff]
    %v808 = vld [vmem:[#allocation5 + $0x28] sm:$0xff]
    %v809 = vld [vmem:[#allocation5 + $0x30] sm:$0xff]
    %v810 = vld [vmem:[#allocation5 + $0x38] sm:$0xff]
    %v811 = vld [vmem:[#allocation5 + $0x40] sm:$0xff]
    %v812 = vld [vmem:[#allocation5 + $0x48] sm:$0xff]
    %v813 = vld [vmem:[#allocation5 + $0x50] sm:$0xff]
    %v814 = vld [vmem:[#allocation5 + $0x58] sm:$0xff]
    %v815 = vld [vmem:[#allocation5 + $0x60] sm:$0xff]
    %v816 = vld [vmem:[#allocation5 + $0x68] sm:$0xff]
    %v817 = vld [vmem:[#allocation5 + $0x70] sm:$0xff]
    %v818 = vld [vmem:[#allocation5 + $0x78] sm:$0xff]
    %v819 = vld [vmem:[#allocation5 + $0x80] sm:$0xff]
    %v820 = vld [vmem:[#allocation5 + $0x88] sm:$0xff]
    %v821 = vld [vmem:[#allocation5 + $0x90] sm:$0xff]
    %v822 = vld [vmem:[#allocation5 + $0x98] sm:$0xff]
    %v823 = vld [vmem:[#allocation5 + $0xa0] sm:$0xff]
    %v824 = vld [vmem:[#allocation5 + $0xa8] sm:$0xff]
    %v825 = vld [vmem:[#allocation5 + $0xb0] sm:$0xff]
    %v826 = vld [vmem:[#allocation5 + $0xb8] sm:$0xff]
    %v827 = vld [vmem:[#allocation5 + $0xc0] sm:$0xff]
    %v828 = vld [vmem:[#allocation5 + $0xc8] sm:$0xff]
    %v829 = vld [vmem:[#allocation5 + $0xd0] sm:$0xff]
    %v830 = vld [vmem:[#allocation5 + $0xd8] sm:$0xff]
    %v831 = vld [vmem:[#allocation5 + $0xe0] sm:$0xff]
    %v832 = vld [vmem:[#allocation5 + $0xe8] sm:$0xff]
    %v833 = vld [vmem:[#allocation5 + $0xf0] sm:$0xff]
    %v834 = vld [vmem:[#allocation5 + $0xf8] sm:$0xff]
    %v867 = vunpack.c.l.b16 %v803
    %v868 = vunpack.c.h.b16 %v803
    %v869 = vunpack.c.l.b16 %v804
    %v870 = vunpack.c.h.b16 %v804
    %v871 = vunpack.c.l.b16 %v805
    %v872 = vunpack.c.h.b16 %v805
    %v873 = vunpack.c.l.b16 %v806
    %v874 = vunpack.c.h.b16 %v806
    %v875 = vunpack.c.l.b16 %v807
    %v876 = vunpack.c.h.b16 %v807
    %v877 = vunpack.c.l.b16 %v808
    %v878 = vunpack.c.h.b16 %v808
    %v879 = vunpack.c.l.b16 %v809
    %v880 = vunpack.c.h.b16 %v809
    %v881 = vunpack.c.l.b16 %v810
    %v882 = vunpack.c.h.b16 %v810
    %v883 = vunpack.c.l.b16 %v811
    %v884 = vunpack.c.h.b16 %v811
    %v885 = vunpack.c.l.b16 %v812
    %v886 = vunpack.c.h.b16 %v812
    %v887 = vunpack.c.l.b16 %v813
    %v888 = vunpack.c.h.b16 %v813
    %v889 = vunpack.c.l.b16 %v814
    %v890 = vunpack.c.h.b16 %v814
    %v891 = vunpack.c.l.b16 %v815
    %v892 = vunpack.c.h.b16 %v815
    %v893 = vunpack.c.l.b16 %v816
    %v894 = vunpack.c.h.b16 %v816
    %v895 = vunpack.c.l.b16 %v817
    %v896 = vunpack.c.h.b16 %v817
    %v897 = vunpack.c.l.b16 %v818
    %v898 = vunpack.c.h.b16 %v818
    %v899 = vunpack.c.l.b16 %v819
    %v900 = vunpack.c.h.b16 %v819
    %v901 = vunpack.c.l.b16 %v820
    %v902 = vunpack.c.h.b16 %v820
    %v903 = vunpack.c.l.b16 %v821
    %v904 = vunpack.c.h.b16 %v821
    %v905 = vunpack.c.l.b16 %v822
    %v906 = vunpack.c.h.b16 %v822
    %v907 = vunpack.c.l.b16 %v823
    %v908 = vunpack.c.h.b16 %v823
    %v909 = vunpack.c.l.b16 %v824
    %v910 = vunpack.c.h.b16 %v824
    %v911 = vunpack.c.l.b16 %v825
    %v912 = vunpack.c.h.b16 %v825
    %v913 = vunpack.c.l.b16 %v826
    %v914 = vunpack.c.h.b16 %v826
    %v915 = vunpack.c.l.b16 %v827
    %v916 = vunpack.c.h.b16 %v827
    %v917 = vunpack.c.l.b16 %v828
    %v918 = vunpack.c.h.b16 %v828
    %v919 = vunpack.c.l.b16 %v829
    %v920 = vunpack.c.h.b16 %v829
    %v921 = vunpack.c.l.b16 %v830
    %v922 = vunpack.c.h.b16 %v830
    %v923 = vunpack.c.l.b16 %v831
    %v924 = vunpack.c.h.b16 %v831
    %v925 = vunpack.c.l.b16 %v832
    %v926 = vunpack.c.h.b16 %v832
    %v927 = vunpack.c.l.b16 %v833
    %v928 = vunpack.c.h.b16 %v833
    %v929 = vunpack.c.l.b16 %v834
    %v930 = vunpack.c.h.b16 %v834
    %v931 = vpack.c.b16 %v871, %v867
    %v932 = vpack.c.b16 %v872, %v868
    %v933 = vpack.c.b16 %v873, %v869
    %v934 = vpack.c.b16 %v874, %v870
    %v935 = vpack.c.b16 %v879, %v875
    %v936 = vpack.c.b16 %v880, %v876
    %v937 = vpack.c.b16 %v881, %v877
    %v938 = vpack.c.b16 %v882, %v878
    %v939 = vpack.c.b16 %v887, %v883
    %v940 = vpack.c.b16 %v888, %v884
    %v941 = vpack.c.b16 %v889, %v885
    %v942 = vpack.c.b16 %v890, %v886
    %v943 = vpack.c.b16 %v895, %v891
    %v944 = vpack.c.b16 %v896, %v892
    %v945 = vpack.c.b16 %v897, %v893
    %v946 = vpack.c.b16 %v898, %v894
    %v947 = vpack.c.b16 %v903, %v899
    %v948 = vpack.c.b16 %v904, %v900
    %v949 = vpack.c.b16 %v905, %v901
    %v950 = vpack.c.b16 %v906, %v902
    %v951 = vpack.c.b16 %v911, %v907
    %v952 = vpack.c.b16 %v912, %v908
    %v953 = vpack.c.b16 %v913, %v909
    %v954 = vpack.c.b16 %v914, %v910
    %v955 = vpack.c.b16 %v919, %v915
    %v956 = vpack.c.b16 %v920, %v916
    %v957 = vpack.c.b16 %v921, %v917
    %v958 = vpack.c.b16 %v922, %v918
    %v959 = vpack.c.b16 %v927, %v923
    %v960 = vpack.c.b16 %v928, %v924
    %v961 = vpack.c.b16 %v929, %v925
    %v962 = vpack.c.b16 %v930, %v926
    %995 = vmatprep.subr.bf16.mxu0 %v932
    %996 = vmatpush1.bf16.msra.mxu0 %v931
    %997 = vmatprep.subr.bf16.mxu0 %v936
    %998 = vmatpush1.bf16.msra.mxu0 %v935
    %999 = vmatprep.subr.bf16.mxu0 %v940
    %1000 = vmatpush1.bf16.msra.mxu0 %v939
    %1001 = vmatprep.subr.bf16.mxu0 %v944
    %1002 = vmatpush1.bf16.msra.mxu0 %v943
    %1003 = vmatprep.subr.bf16.mxu0 %v948
    %1004 = vmatpush1.bf16.msra.mxu0 %v947
    %1005 = vmatprep.subr.bf16.mxu0 %v952
    %1006 = vmatpush1.bf16.msra.mxu0 %v951
    %1007 = vmatprep.subr.bf16.mxu0 %v956
    %1008 = vmatpush1.bf16.msra.mxu0 %v955
    %1009 = vmatprep.subr.bf16.mxu0 %v960
    %1010 = vmatpush1.bf16.msra.mxu0 %v959
    %1011 = vmatprep.subr.bf16.mxu0 0
    %1012 = vmatpush1.bf16.msra.mxu0 0
    %1013 = vmatprep.subr.bf16.mxu0 0
    %1014 = vmatpush1.bf16.msra.mxu0 0
    %1015 = vmatprep.subr.bf16.mxu0 0
    %1016 = vmatpush1.bf16.msra.mxu0 0
    %1017 = vmatprep.subr.bf16.mxu0 0
    %1018 = vmatpush1.bf16.msra.mxu0 0
    %1019 = vmatprep.subr.bf16.mxu0 0
    %1020 = vmatpush1.bf16.msra.mxu0 0
    %1021 = vmatprep.subr.bf16.mxu0 0
    %1022 = vmatpush1.bf16.msra.mxu0 0
    %1023 = vmatprep.subr.bf16.mxu0 0
    %1024 = vmatpush1.bf16.msra.mxu0 0
    %1025 = vmatprep.subr.bf16.mxu0 0
    %1026 = vmatpush1.bf16.msra.mxu0 0
    %1027 = vmatprep.mubr.bf16.mxu0 0
    %1028 = vmatmul.mubr.bf16.gmra.mrb[0].mxu0 %v799
    %v1029 = vpop.f32.mrb[0].mxu0
    %v1030 = vadd.f32 0.0, %v1029
    %v1031 = vpop.f32.mrb[0].mxu0
    %v1032 = vadd.f32 0.0, %v1031
    %v1033 = vpop.f32.mrb[0].mxu0
    %v1034 = vadd.f32 0.0, %v1033
    %v1035 = vpop.f32.mrb[0].mxu0
    %v1036 = vadd.f32 0.0, %v1035
    %1037 = vmatprep.mubr.bf16.mxu0 0
    %1038 = vmatmul.mubr.bf16.gmra.mrb[0].mxu0 %v800
    %v1039 = vpop.f32.mrb[0].mxu0
    %v1040 = vadd.f32 0.0, %v1039
    %v1041 = vpop.f32.mrb[0].mxu0
    %v1042 = vadd.f32 0.0, %v1041
    %v1043 = vpop.f32.mrb[0].mxu0
    %v1044 = vadd.f32 0.0, %v1043
    %v1045 = vpop.f32.mrb[0].mxu0
    %v1046 = vadd.f32 0.0, %v1045
    %1047 = vmatprep.mubr.bf16.mxu0 0
    %1048 = vmatmul.mubr.bf16.gmra.mrb[0].mxu0 %v801
    %v1049 = vpop.f32.mrb[0].mxu0
    %v1050 = vadd.f32 0.0, %v1049
    %v1051 = vpop.f32.mrb[0].mxu0
    %v1052 = vadd.f32 0.0, %v1051
    %v1053 = vpop.f32.mrb[0].mxu0
    %v1054 = vadd.f32 0.0, %v1053
    %v1055 = vpop.f32.mrb[0].mxu0
    %v1056 = vadd.f32 0.0, %v1055
    %1057 = vmatprep.mubr.bf16.mxu0 0
    %1058 = vmatmul.mubr.bf16.gmra.mrb[0].mxu0 %v802
    %v1059 = vpop.f32.mrb[0].mxu0
    %v1060 = vadd.f32 0.0, %v1059
    %v1061 = vpop.f32.mrb[0].mxu0
    %v1062 = vadd.f32 0.0, %v1061
    %v1063 = vpop.f32.mrb[0].mxu0
    %v1064 = vadd.f32 0.0, %v1063
    %v1065 = vpop.f32.mrb[0].mxu0
    %v1066 = vadd.f32 0.0, %v1065
    %1067 = vdwg.mxu0
    %1068 = vmatprep.subr.bf16.mxu0 %v934
    %1069 = vmatpush1.bf16.msra.mxu0 %v933
    %1070 = vmatprep.subr.bf16.mxu0 %v938
    %1071 = vmatpush1.bf16.msra.mxu0 %v937
    %1072 = vmatprep.subr.bf16.mxu0 %v942
    %1073 = vmatpush1.bf16.msra.mxu0 %v941
    %1074 = vmatprep.subr.bf16.mxu0 %v946
    %1075 = vmatpush1.bf16.msra.mxu0 %v945
    %1076 = vmatprep.subr.bf16.mxu0 %v950
    %1077 = vmatpush1.bf16.msra.mxu0 %v949
    %1078 = vmatprep.subr.bf16.mxu0 %v954
    %1079 = vmatpush1.bf16.msra.mxu0 %v953
    %1080 = vmatprep.subr.bf16.mxu0 %v958
    %1081 = vmatpush1.bf16.msra.mxu0 %v957
    %1082 = vmatprep.subr.bf16.mxu0 %v962
    %1083 = vmatpush1.bf16.msra.mxu0 %v961
    %1084 = vmatprep.subr.bf16.mxu0 0
    %1085 = vmatpush1.bf16.msra.mxu0 0
    %1086 = vmatprep.subr.bf16.mxu0 0
    %1087 = vmatpush1.bf16.msra.mxu0 0
    %1088 = vmatprep.subr.bf16.mxu0 0
    %1089 = vmatpush1.bf16.msra.mxu0 0
    %1090 = vmatprep.subr.bf16.mxu0 0
    %1091 = vmatpush1.bf16.msra.mxu0 0
    %1092 = vmatprep.subr.bf16.mxu0 0
    %1093 = vmatpush1.bf16.msra.mxu0 0
    %1094 = vmatprep.subr.bf16.mxu0 0
    %1095 = vmatpush1.bf16.msra.mxu0 0
    %1096 = vmatprep.subr.bf16.mxu0 0
    %1097 = vmatpush1.bf16.msra.mxu0 0
    %1098 = vmatprep.subr.bf16.mxu0 0
    %1099 = vmatpush1.bf16.msra.mxu0 0
    %1100 = vmatprep.mubr.bf16.mxu0 0
    %1101 = vmatmul.mubr.bf16.gmra.mrb[0].mxu0 %v799
    %v1102 = vpop.f32.mrb[0].mxu0
    %v1103 = vadd.f32 0.0, %v1102
    %v1104 = vpop.f32.mrb[0].mxu0
    %v1105 = vadd.f32 0.0, %v1104
    %v1106 = vpop.f32.mrb[0].mxu0
    %v1107 = vadd.f32 0.0, %v1106
    %v1108 = vpop.f32.mrb[0].mxu0
    %v1109 = vadd.f32 0.0, %v1108
    %1110 = vmatprep.mubr.bf16.mxu0 0
    %1111 = vmatmul.mubr.bf16.gmra.mrb[0].mxu0 %v800
    %v1112 = vpop.f32.mrb[0].mxu0
    %v1113 = vadd.f32 0.0, %v1112
    %v1114 = vpop.f32.mrb[0].mxu0
    %v1115 = vadd.f32 0.0, %v1114
    %v1116 = vpop.f32.mrb[0].mxu0
    %v1117 = vadd.f32 0.0, %v1116
    %v1118 = vpop.f32.mrb[0].mxu0
    %v1119 = vadd.f32 0.0, %v1118
    %1120 = vmatprep.mubr.bf16.mxu0 0
    %1121 = vmatmul.mubr.bf16.gmra.mrb[0].mxu0 %v801
    %v1122 = vpop.f32.mrb[0].mxu0
    %v1123 = vadd.f32 0.0, %v1122
    %v1124 = vpop.f32.mrb[0].mxu0
    %v1125 = vadd.f32 0.0, %v1124
    %v1126 = vpop.f32.mrb[0].mxu0
    %v1127 = vadd.f32 0.0, %v1126
    %v1128 = vpop.f32.mrb[0].mxu0
    %v1129 = vadd.f32 0.0, %v1128
    %1130 = vmatprep.mubr.bf16.mxu0 0
    %1131 = vmatmul.mubr.bf16.gmra.mrb[0].mxu0 %v802
    %v1132 = vpop.f32.mrb[0].mxu0
    %v1133 = vadd.f32 0.0, %v1132
    %v1134 = vpop.f32.mrb[0].mxu0
    %v1135 = vadd.f32 0.0, %v1134
    %v1136 = vpop.f32.mrb[0].mxu0
    %v1137 = vadd.f32 0.0, %v1136
    %v1138 = vpop.f32.mrb[0].mxu0
    %v1139 = vadd.f32 0.0, %v1138
    %1140 = vdwg.mxu0
    %v1141 = vmax.f32 %v1030, 0.0
    %v1142 = vmax.f32 %v1034, 0.0
    %v1143 = vmax.f32 %v1040, 0.0
    %v1144 = vmax.f32 %v1044, 0.0
    %v1145 = vmax.f32 %v1050, 0.0
    %v1146 = vmax.f32 %v1054, 0.0
    %v1147 = vmax.f32 %v1060, 0.0
    %v1148 = vmax.f32 %v1064, 0.0
    %v1149 = vpack.c.bf16 %v1142, %v1141
    %v1150 = vpack.c.bf16 %v1144, %v1143
    %v1151 = vpack.c.bf16 %v1146, %v1145
    %v1152 = vpack.c.bf16 %v1148, %v1147
    %v1153 = vld [vmem:[#allocation7] sm:$0xf]
    %v1154 = vld [vmem:[#allocation7 + $0x4] sm:$0xf]
    %v1155 = vld [vmem:[#allocation7 + $0x8] sm:$0xf]
    %v1156 = vld [vmem:[#allocation7 + $0xc] sm:$0xf]
    %v1157 = vld [vmem:[#allocation7 + $0x10] sm:$0xf]
    %v1158 = vld [vmem:[#allocation7 + $0x14] sm:$0xf]
    %v1159 = vld [vmem:[#allocation7 + $0x18] sm:$0xf]
    %v1160 = vld [vmem:[#allocation7 + $0x1c] sm:$0xf]
    %v1161 = vld [vmem:[#allocation7 + $0x20] sm:$0xf]
    %v1162 = vld [vmem:[#allocation7 + $0x24] sm:$0xf]
    %v1163 = vld [vmem:[#allocation7 + $0x28] sm:$0xf]
    %v1164 = vld [vmem:[#allocation7 + $0x2c] sm:$0xf]
    %v1165 = vld [vmem:[#allocation7 + $0x30] sm:$0xf]
    %v1166 = vld [vmem:[#allocation7 + $0x34] sm:$0xf]
    %v1167 = vld [vmem:[#allocation7 + $0x38] sm:$0xf]
    %v1168 = vld [vmem:[#allocation7 + $0x3c] sm:$0xf]
    %v1185 = vunpack.c.l.b16 %v1153
    %v1186 = vunpack.c.l.b16 %v1154
    %v1187 = vunpack.c.l.b16 %v1155
    %v1188 = vunpack.c.l.b16 %v1156
    %v1189 = vunpack.c.l.b16 %v1157
    %v1190 = vunpack.c.l.b16 %v1158
    %v1191 = vunpack.c.l.b16 %v1159
    %v1192 = vunpack.c.l.b16 %v1160
    %v1193 = vunpack.c.l.b16 %v1161
    %v1194 = vunpack.c.l.b16 %v1162
    %v1195 = vunpack.c.l.b16 %v1163
    %v1196 = vunpack.c.l.b16 %v1164
    %v1197 = vunpack.c.l.b16 %v1165
    %v1198 = vunpack.c.l.b16 %v1166
    %v1199 = vunpack.c.l.b16 %v1167
    %v1200 = vunpack.c.l.b16 %v1168
    %v1201 = vpack.c.b16 %v1186, %v1185
    %v1202 = vpack.c.b16 %v1188, %v1187
    %v1203 = vpack.c.b16 %v1190, %v1189
    %v1204 = vpack.c.b16 %v1192, %v1191
    %v1205 = vpack.c.b16 %v1194, %v1193
    %v1206 = vpack.c.b16 %v1196, %v1195
    %v1207 = vpack.c.b16 %v1198, %v1197
    %v1208 = vpack.c.b16 %v1200, %v1199
    %1217 = vmatprep.subr.bf16.mxu0 0
    %1218 = vmatpush1.bf16.msra.mxu0 %v1201
    %1219 = vmatprep.subr.bf16.mxu0 0
    %1220 = vmatpush1.bf16.msra.mxu0 %v1202
    %1221 = vmatprep.subr.bf16.mxu0 0
    %1222 = vmatpush1.bf16.msra.mxu0 %v1203
    %1223 = vmatprep.subr.bf16.mxu0 0
    %1224 = vmatpush1.bf16.msra.mxu0 %v1204
    %1225 = vmatprep.subr.bf16.mxu0 0
    %1226 = vmatpush1.bf16.msra.mxu0 %v1205
    %1227 = vmatprep.subr.bf16.mxu0 0
    %1228 = vmatpush1.bf16.msra.mxu0 %v1206
    %1229 = vmatprep.subr.bf16.mxu0 0
    %1230 = vmatpush1.bf16.msra.mxu0 %v1207
    %1231 = vmatprep.subr.bf16.mxu0 0
    %1232 = vmatpush1.bf16.msra.mxu0 %v1208
    %1233 = vmatprep.subr.bf16.mxu0 0
    %1234 = vmatpush1.bf16.msra.mxu0 0
    %1235 = vmatprep.subr.bf16.mxu0 0
    %1236 = vmatpush1.bf16.msra.mxu0 0
    %1237 = vmatprep.subr.bf16.mxu0 0
    %1238 = vmatpush1.bf16.msra.mxu0 0
    %1239 = vmatprep.subr.bf16.mxu0 0
    %1240 = vmatpush1.bf16.msra.mxu0 0
    %1241 = vmatprep.subr.bf16.mxu0 0
    %1242 = vmatpush1.bf16.msra.mxu0 0
    %1243 = vmatprep.subr.bf16.mxu0 0
    %1244 = vmatpush1.bf16.msra.mxu0 0
    %1245 = vmatprep.subr.bf16.mxu0 0
    %1246 = vmatpush1.bf16.msra.mxu0 0
    %1247 = vmatprep.subr.bf16.mxu0 0
    %1248 = vmatpush1.bf16.msra.mxu0 0
    %1249 = vmatprep.mubr.bf16.mxu0 0
    %1250 = vmatmul.mubr.bf16.gmra.mrb[0].mxu0 %v1149
    %v1251 = vpop.f32.mrb[0].mxu0
    %v1252 = vadd.f32 0.0, %v1251
    %v1253 = vpop.f32.mrb[0].mxu0
    %v1254 = vpop.f32.mrb[0].mxu0
    %v1255 = vadd.f32 0.0, %v1254
    %v1256 = vpop.f32.mrb[0].mxu0
    %1257 = vmatprep.mubr.bf16.mxu0 0
    %1258 = vmatmul.mubr.bf16.gmra.mrb[0].mxu0 %v1150
    %v1259 = vpop.f32.mrb[0].mxu0
    %v1260 = vadd.f32 0.0, %v1259
    %v1261 = vpop.f32.mrb[0].mxu0
    %v1262 = vpop.f32.mrb[0].mxu0
    %v1263 = vadd.f32 0.0, %v1262
    %v1264 = vpop.f32.mrb[0].mxu0
    %1265 = vmatprep.mubr.bf16.mxu0 0
    %1266 = vmatmul.mubr.bf16.gmra.mrb[0].mxu0 %v1151
    %v1267 = vpop.f32.mrb[0].mxu0
    %v1268 = vadd.f32 0.0, %v1267
    %v1269 = vpop.f32.mrb[0].mxu0
    %v1270 = vpop.f32.mrb[0].mxu0
    %v1271 = vadd.f32 0.0, %v1270
    %v1272 = vpop.f32.mrb[0].mxu0
    %1273 = vmatprep.mubr.bf16.mxu0 0
    %1274 = vmatmul.mubr.bf16.gmra.mrb[0].mxu0 %v1152
    %v1275 = vpop.f32.mrb[0].mxu0
    %v1276 = vadd.f32 0.0, %v1275
    %v1277 = vpop.f32.mrb[0].mxu0
    %v1278 = vpop.f32.mrb[0].mxu0
    %v1279 = vadd.f32 0.0, %v1278
    %v1280 = vpop.f32.mrb[0].mxu0
    %1281 = vdwg.mxu0
    %1282 = vst [vmem:[#allocation10] sm:$0xff] %v1252
    %1283 = vst [vmem:[#allocation10 + $0x8] sm:$0xff] %v1255
    %1284 = vst [vmem:[#allocation10 + $0x10] sm:$0xff] %v1260
    %1285 = vst [vmem:[#allocation10 + $0x18] sm:$0xff] %v1263
    %1286 = vst [vmem:[#allocation10 + $0x20] sm:$0xff] %v1268
    %1287 = vst [vmem:[#allocation10 + $0x28] sm:$0xff] %v1271
    %1288 = vst [vmem:[#allocation10 + $0x30] sm:$0xff] %v1276
    %1289 = vst [vmem:[#allocation10 + $0x38] sm:$0xff] %v1279
    %v1290 = vld [vmem:[%s8 + $0x3] sm:$0x1]
    %v1291 = vlaneseq
    %v1292 = vshrl.u32 %v1291, 7
    %v1293 = vsub.s32 0, %v1292
    %v1294 = vrot.slane %v1290, %v1293
    %v1295 = vmul.f32 %v1032, %v1294
    %v1296 = vmul.f32 %v1036, %v1294
    %v1297 = vmul.f32 %v1042, %v1294
    %v1298 = vmul.f32 %v1046, %v1294
    %v1299 = vmul.f32 %v1052, %v1294
    %v1300 = vmul.f32 %v1056, %v1294
    %v1301 = vmul.f32 %v1062, %v1294
    %v1302 = vmul.f32 %v1066, %v1294
    %v1303 = vld [vmem:[%s8 + $0x4] sm:$0x1]
    %v1304 = vlaneseq
    %v1305 = vshrl.u32 %v1304, 7
    %v1306 = vsub.s32 0, %v1305
    %v1307 = vrot.slane %v1303, %v1306
    %v1308 = vadd.f32 %v1295, %v1307
    %v1309 = vadd.f32 %v1296, %v1307
    %v1310 = vadd.f32 %v1297, %v1307
    %v1311 = vadd.f32 %v1298, %v1307
    %v1312 = vadd.f32 %v1299, %v1307
    %v1313 = vadd.f32 %v1300, %v1307
    %v1314 = vadd.f32 %v1301, %v1307
    %v1315 = vadd.f32 %v1302, %v1307
    %v1316 = vsub.f32 0.0, %v1308
    %v1317 = vsub.f32 0.0, %v1309
    %v1318 = vsub.f32 0.0, %v1310
    %v1319 = vsub.f32 0.0, %v1311
    %v1320 = vsub.f32 0.0, %v1312
    %v1321 = vsub.f32 0.0, %v1313
    %v1322 = vsub.f32 0.0, %v1314
    %v1323 = vsub.f32 0.0, %v1315
    %v1324 = vmul.f32 %v1316, 1.442695
    %v1325 = vpow.pop %v1324
    %v1326 = vmul.f32 %v1317, 1.442695
    %v1327 = vpow.pop %v1326
    %v1328 = vmul.f32 %v1318, 1.442695
    %v1329 = vpow.pop %v1328
    %v1330 = vmul.f32 %v1319, 1.442695
    %v1331 = vpow.pop %v1330
    %v1332 = vmul.f32 %v1320, 1.442695
    %v1333 = vpow.pop %v1332
    %v1334 = vmul.f32 %v1321, 1.442695
    %v1335 = vpow.pop %v1334
    %v1336 = vmul.f32 %v1322, 1.442695
    %v1337 = vpow.pop %v1336
    %v1338 = vmul.f32 %v1323, 1.442695
    %v1339 = vpow.pop %v1338
    %v1340 = vadd.f32 %v1325, 1.0
    %v1341 = vadd.f32 %v1327, 1.0
    %v1342 = vadd.f32 %v1329, 1.0
    %v1343 = vadd.f32 %v1331, 1.0
    %v1344 = vadd.f32 %v1333, 1.0
    %v1345 = vadd.f32 %v1335, 1.0
    %v1346 = vadd.f32 %v1337, 1.0
    %v1347 = vadd.f32 %v1339, 1.0
    %v1348 = vrcp.pop %v1340
    %v1349 = vmul.f32 1.0, %v1348
    %v1350 = vrcp.pop %v1341
    %v1351 = vmul.f32 1.0, %v1350
    %v1352 = vrcp.pop %v1342
    %v1353 = vmul.f32 1.0, %v1352
    %v1354 = vrcp.pop %v1343
    %v1355 = vmul.f32 1.0, %v1354
    %v1356 = vrcp.pop %v1344
    %v1357 = vmul.f32 1.0, %v1356
    %v1358 = vrcp.pop %v1345
    %v1359 = vmul.f32 1.0, %v1358
    %v1360 = vrcp.pop %v1346
    %v1361 = vmul.f32 1.0, %v1360
    %v1362 = vrcp.pop %v1347
    %v1363 = vmul.f32 1.0, %v1362
    %v1364 = vmul.f32 %v1308, %v1349
    %v1365 = vmul.f32 %v1309, %v1351
    %v1366 = vmul.f32 %v1310, %v1353
    %v1367 = vmul.f32 %v1311, %v1355
    %v1368 = vmul.f32 %v1312, %v1357
    %v1369 = vmul.f32 %v1313, %v1359
    %v1370 = vmul.f32 %v1314, %v1361
    %v1371 = vmul.f32 %v1315, %v1363
    %v1372 = vld [vmem:[%s8 + $0x5] sm:$0x1]
    %v1373 = vlaneseq
    %v1374 = vshrl.u32 %v1373, 7
    %v1375 = vsub.s32 0, %v1374
    %v1376 = vrot.slane %v1372, %v1375
    %v1377 = vmul.f32 %v1364, %v1376
    %v1378 = vmul.f32 %v1365, %v1376
    %v1379 = vmul.f32 %v1366, %v1376
    %v1380 = vmul.f32 %v1367, %v1376
    %v1381 = vmul.f32 %v1368, %v1376
    %v1382 = vmul.f32 %v1369, %v1376
    %v1383 = vmul.f32 %v1370, %v1376
    %v1384 = vmul.f32 %v1371, %v1376
    %v1385 = vld [vmem:[%s8 + $0x6] sm:$0x1]
    %v1386 = vlaneseq
    %v1387 = vshrl.u32 %v1386, 7
    %v1388 = vsub.s32 0, %v1387
    %v1389 = vrot.slane %v1385, %v1388
    %v1390 = vadd.f32 %v1377, %v1389
    %v1391 = vadd.f32 %v1378, %v1389
    %v1392 = vadd.f32 %v1379, %v1389
    %v1393 = vadd.f32 %v1380, %v1389
    %v1394 = vadd.f32 %v1381, %v1389
    %v1395 = vadd.f32 %v1382, %v1389
    %v1396 = vadd.f32 %v1383, %v1389
    %v1397 = vadd.f32 %v1384, %v1389
    %1398 = vadd.xlane.f32.xlu0 %v1390
    %v1399 = vpop.xlane.xlu0 %1398
    %1400 = vadd.xlane.f32.xlu0 %v1391
    %v1401 = vpop.xlane.xlu0 %1400
    %1402 = vadd.xlane.f32.xlu0 %v1392
    %v1403 = vpop.xlane.xlu0 %1402
    %1404 = vadd.xlane.f32.xlu0 %v1393
    %v1405 = vpop.xlane.xlu0 %1404
    %1406 = vadd.xlane.f32.xlu0 %v1394
    %v1407 = vpop.xlane.xlu0 %1406
    %1408 = vadd.xlane.f32.xlu0 %v1395
    %v1409 = vpop.xlane.xlu0 %1408
    %1410 = vadd.xlane.f32.xlu0 %v1396
    %v1411 = vpop.xlane.xlu0 %1410
    %1412 = vadd.xlane.f32.xlu0 %v1397
    %v1413 = vpop.xlane.xlu0 %1412
    %v1414 = vsub.f32 0.0, %v1399
    %v1415 = vsub.f32 0.0, %v1401
    %v1416 = vsub.f32 0.0, %v1403
    %v1417 = vsub.f32 0.0, %v1405
    %v1418 = vsub.f32 0.0, %v1407
    %v1419 = vsub.f32 0.0, %v1409
    %v1420 = vsub.f32 0.0, %v1411
    %v1421 = vsub.f32 0.0, %v1413
    %v1422 = vmul.f32 %v1414, 1.442695
    %v1423 = vpow.pop %v1422
    %v1424 = vmul.f32 %v1415, 1.442695
    %v1425 = vpow.pop %v1424
    %v1426 = vmul.f32 %v1416, 1.442695
    %v1427 = vpow.pop %v1426
    %v1428 = vmul.f32 %v1417, 1.442695
    %v1429 = vpow.pop %v1428
    %v1430 = vmul.f32 %v1418, 1.442695
    %v1431 = vpow.pop %v1430
    %v1432 = vmul.f32 %v1419, 1.442695
    %v1433 = vpow.pop %v1432
    %v1434 = vmul.f32 %v1420, 1.442695
    %v1435 = vpow.pop %v1434
    %v1436 = vmul.f32 %v1421, 1.442695
    %v1437 = vpow.pop %v1436
    %v1438 = vadd.f32 %v1423, 1.0
    %v1439 = vadd.f32 %v1425, 1.0
    %v1440 = vadd.f32 %v1427, 1.0
    %v1441 = vadd.f32 %v1429, 1.0
    %v1442 = vadd.f32 %v1431, 1.0
    %v1443 = vadd.f32 %v1433, 1.0
    %v1444 = vadd.f32 %v1435, 1.0
    %v1445 = vadd.f32 %v1437, 1.0
    %v1446 = vrcp.pop %v1438
    %v1447 = vmul.f32 1.0, %v1446
    %v1448 = vrcp.pop %v1439
    %v1449 = vmul.f32 1.0, %v1448
    %v1450 = vrcp.pop %v1440
    %v1451 = vmul.f32 1.0, %v1450
    %v1452 = vrcp.pop %v1441
    %v1453 = vmul.f32 1.0, %v1452
    %v1454 = vrcp.pop %v1442
    %v1455 = vmul.f32 1.0, %v1454
    %v1456 = vrcp.pop %v1443
    %v1457 = vmul.f32 1.0, %v1456
    %v1458 = vrcp.pop %v1444
    %v1459 = vmul.f32 1.0, %v1458
    %v1460 = vrcp.pop %v1445
    %v1461 = vmul.f32 1.0, %v1460
    %1462 = vadd.xlane.f32.xlu0 %v1103
    %v1463 = vpop.xlane.xlu0 %1462
    %1464 = vadd.xlane.f32.xlu0 %v1107
    %v1465 = vpop.xlane.xlu0 %1464
    %1466 = vadd.xlane.f32.xlu0 %v1113
    %v1467 = vpop.xlane.xlu0 %1466
    %1468 = vadd.xlane.f32.xlu0 %v1117
    %v1469 = vpop.xlane.xlu0 %1468
    %1470 = vadd.xlane.f32.xlu0 %v1123
    %v1471 = vpop.xlane.xlu0 %1470
    %1472 = vadd.xlane.f32.xlu0 %v1127
    %v1473 = vpop.xlane.xlu0 %1472
    %1474 = vadd.xlane.f32.xlu0 %v1133
    %v1475 = vpop.xlane.xlu0 %1474
    %1476 = vadd.xlane.f32.xlu0 %v1137
    %v1477 = vpop.xlane.xlu0 %1476
    %v1478 = vrcp.pop 128.0
    %v1479 = vmul.f32 %v1463, %v1478
    %v1480 = vmul.f32 %v1465, %v1478
    %v1481 = vmul.f32 %v1467, %v1478
    %v1482 = vmul.f32 %v1469, %v1478
    %v1483 = vmul.f32 %v1471, %v1478
    %v1484 = vmul.f32 %v1473, %v1478
    %v1485 = vmul.f32 %v1475, %v1478
    %v1486 = vmul.f32 %v1477, %v1478
    %v1487 = vsub.f32 %v1103, %v1479
    %v1488 = vsub.f32 %v1107, %v1480
    %v1489 = vsub.f32 %v1113, %v1481
    %v1490 = vsub.f32 %v1117, %v1482
    %v1491 = vsub.f32 %v1123, %v1483
    %v1492 = vsub.f32 %v1127, %v1484
    %v1493 = vsub.f32 %v1133, %v1485
    %v1494 = vsub.f32 %v1137, %v1486
    %v1495 = vmul.f32 %v1487, %v1487
    %v1496 = vmul.f32 %v1488, %v1488
    %v1497 = vmul.f32 %v1489, %v1489
    %v1498 = vmul.f32 %v1490, %v1490
    %v1499 = vmul.f32 %v1491, %v1491
    %v1500 = vmul.f32 %v1492, %v1492
    %v1501 = vmul.f32 %v1493, %v1493
    %v1502 = vmul.f32 %v1494, %v1494
    %1503 = vadd.xlane.f32.xlu0 %v1495
    %v1504 = vpop.xlane.xlu0 %1503
    %1505 = vadd.xlane.f32.xlu0 %v1496
    %v1506 = vpop.xlane.xlu0 %1505
    %1507 = vadd.xlane.f32.xlu0 %v1497
    %v1508 = vpop.xlane.xlu0 %1507
    %1509 = vadd.xlane.f32.xlu0 %v1498
    %v1510 = vpop.xlane.xlu0 %1509
    %1511 = vadd.xlane.f32.xlu0 %v1499
    %v1512 = vpop.xlane.xlu0 %1511
    %1513 = vadd.xlane.f32.xlu0 %v1500
    %v1514 = vpop.xlane.xlu0 %1513
    %1515 = vadd.xlane.f32.xlu0 %v1501
    %v1516 = vpop.xlane.xlu0 %1515
    %1517 = vadd.xlane.f32.xlu0 %v1502
    %v1518 = vpop.xlane.xlu0 %1517
    %v1519 = vmul.f32 %v1504, %v1478
    %v1520 = vmul.f32 %v1506, %v1478
    %v1521 = vmul.f32 %v1508, %v1478
    %v1522 = vmul.f32 %v1510, %v1478
    %v1523 = vmul.f32 %v1512, %v1478
    %v1524 = vmul.f32 %v1514, %v1478
    %v1525 = vmul.f32 %v1516, %v1478
    %v1526 = vmul.f32 %v1518, %v1478
    %v1527 = vadd.f32 %v1519, 1e-05
    %v1528 = vadd.f32 %v1520, 1e-05
    %v1529 = vadd.f32 %v1521, 1e-05
    %v1530 = vadd.f32 %v1522, 1e-05
    %v1531 = vadd.f32 %v1523, 1e-05
    %v1532 = vadd.f32 %v1524, 1e-05
    %v1533 = vadd.f32 %v1525, 1e-05
    %v1534 = vadd.f32 %v1526, 1e-05
    %v1535 = vrsqrt.pop %v1527
    %v1536 = vrsqrt.pop %v1528
    %v1537 = vrsqrt.pop %v1529
    %v1538 = vrsqrt.pop %v1530
    %v1539 = vrsqrt.pop %v1531
    %v1540 = vrsqrt.pop %v1532
    %v1541 = vrsqrt.pop %v1533
    %v1542 = vrsqrt.pop %v1534
    %v1543 = vmul.f32 %v1487, %v1535
    %v1544 = vmul.f32 %v1488, %v1536
    %v1545 = vmul.f32 %v1489, %v1537
    %v1546 = vmul.f32 %v1490, %v1538
    %v1547 = vmul.f32 %v1491, %v1539
    %v1548 = vmul.f32 %v1492, %v1540
    %v1549 = vmul.f32 %v1493, %v1541
    %v1550 = vmul.f32 %v1494, %v1542
    %v1551 = vld [vmem:[%s8 + $0x9] sm:$0x1]
    %v1552 = vlaneseq
    %v1553 = vshrl.u32 %v1552, 7
    %v1554 = vsub.s32 0, %v1553
    %v1555 = vrot.slane %v1551, %v1554
    %v1556 = vmul.f32 %v1543, %v1555
    %v1557 = vmul.f32 %v1544, %v1555
    %v1558 = vmul.f32 %v1545, %v1555
    %v1559 = vmul.f32 %v1546, %v1555
    %v1560 = vmul.f32 %v1547, %v1555
    %v1561 = vmul.f32 %v1548, %v1555
    %v1562 = vmul.f32 %v1549, %v1555
    %v1563 = vmul.f32 %v1550, %v1555
    %v1564 = vld [vmem:[%s8 + $0xa] sm:$0x1]
    %v1565 = vlaneseq
    %v1566 = vshrl.u32 %v1565, 7
    %v1567 = vsub.s32 0, %v1566
    %v1568 = vrot.slane %v1564, %v1567
    %v1569 = vadd.f32 %v1556, %v1568
    %v1570 = vadd.f32 %v1557, %v1568
    %v1571 = vadd.f32 %v1558, %v1568
    %v1572 = vadd.f32 %v1559, %v1568
    %v1573 = vadd.f32 %v1560, %v1568
    %v1574 = vadd.f32 %v1561, %v1568
    %v1575 = vadd.f32 %v1562, %v1568
    %v1576 = vadd.f32 %v1563, %v1568
    %v1577 = vmul.f32 %v1569, 0.5
    %v1578 = vmul.f32 %v1570, 0.5
    %v1579 = vmul.f32 %v1571, 0.5
    %v1580 = vmul.f32 %v1572, 0.5
    %v1581 = vmul.f32 %v1573, 0.5
    %v1582 = vmul.f32 %v1574, 0.5
    %v1583 = vmul.f32 %v1575, 0.5
    %v1584 = vmul.f32 %v1576, 0.5
    %v1585 = vmul.f32 %v1569, 0.70710677
    %v1586 = vmul.f32 %v1570, 0.70710677
    %v1587 = vmul.f32 %v1571, 0.70710677
    %v1588 = vmul.f32 %v1572, 0.70710677
    %v1589 = vmul.f32 %v1573, 0.70710677
    %v1590 = vmul.f32 %v1574, 0.70710677
    %v1591 = vmul.f32 %v1575, 0.70710677
    %v1592 = vmul.f32 %v1576, 0.70710677
    %v1593 = verf.f32.pop %v1585
    %v1594 = verf.f32.pop %v1586
    %v1595 = verf.f32.pop %v1587
    %v1596 = verf.f32.pop %v1588
    %v1597 = verf.f32.pop %v1589
    %v1598 = verf.f32.pop %v1590
    %v1599 = verf.f32.pop %v1591
    %v1600 = verf.f32.pop %v1592
    %v1601 = vadd.f32 %v1593, 1.0
    %v1602 = vadd.f32 %v1594, 1.0
    %v1603 = vadd.f32 %v1595, 1.0
    %v1604 = vadd.f32 %v1596, 1.0
    %v1605 = vadd.f32 %v1597, 1.0
    %v1606 = vadd.f32 %v1598, 1.0
    %v1607 = vadd.f32 %v1599, 1.0
    %v1608 = vadd.f32 %v1600, 1.0
    %v1609 = vmul.f32 %v1577, %v1601
    %v1610 = vmul.f32 %v1578, %v1602
    %v1611 = vmul.f32 %v1579, %v1603
    %v1612 = vmul.f32 %v1580, %v1604
    %v1613 = vmul.f32 %v1581, %v1605
    %v1614 = vmul.f32 %v1582, %v1606
    %v1615 = vmul.f32 %v1583, %v1607
    %v1616 = vmul.f32 %v1584, %v1608
    %v1617 = vpack.c.bf16 %v1610, %v1609
    %v1618 = vpack.c.bf16 %v1612, %v1611
    %v1619 = vpack.c.bf16 %v1614, %v1613
    %v1620 = vpack.c.bf16 %v1616, %v1615
    %v1621 = vld [vmem:[#allocation8] sm:$0xf]
    %v1622 = vld [vmem:[#allocation8 + $0x4] sm:$0xf]
    %v1623 = vld [vmem:[#allocation8 + $0x8] sm:$0xf]
    %v1624 = vld [vmem:[#allocation8 + $0xc] sm:$0xf]
    %v1625 = vld [vmem:[#allocation8 + $0x10] sm:$0xf]
    %v1626 = vld [vmem:[#allocation8 + $0x14] sm:$0xf]
    %v1627 = vld [vmem:[#allocation8 + $0x18] sm:$0xf]
    %v1628 = vld [vmem:[#allocation8 + $0x1c] sm:$0xf]
    %v1629 = vld [vmem:[#allocation8 + $0x20] sm:$0xf]
    %v1630 = vld [vmem:[#allocation8 + $0x24] sm:$0xf]
    %v1631 = vld [vmem:[#allocation8 + $0x28] sm:$0xf]
    %v1632 = vld [vmem:[#allocation8 + $0x2c] sm:$0xf]
    %v1633 = vld [vmem:[#allocation8 + $0x30] sm:$0xf]
    %v1634 = vld [vmem:[#allocation8 + $0x34] sm:$0xf]
    %v1635 = vld [vmem:[#allocation8 + $0x38] sm:$0xf]
    %v1636 = vld [vmem:[#allocation8 + $0x3c] sm:$0xf]
    %v1637 = vld [vmem:[%s8 + $0xb] sm:$0x1]
    %v1638 = vlaneseq
    %v1639 = vshrl.u32 %v1638, 7
    %v1640 = vsub.s32 0, %v1639
    %v1641 = vrot.slane %v1637, %v1640
    %v1658 = vunpack.c.l.b16 %v1621
    %v1659 = vunpack.c.l.b16 %v1622
    %v1660 = vunpack.c.l.b16 %v1623
    %v1661 = vunpack.c.l.b16 %v1624
    %v1662 = vunpack.c.l.b16 %v1625
    %v1663 = vunpack.c.l.b16 %v1626
    %v1664 = vunpack.c.l.b16 %v1627
    %v1665 = vunpack.c.l.b16 %v1628
    %v1666 = vunpack.c.l.b16 %v1629
    %v1667 = vunpack.c.l.b16 %v1630
    %v1668 = vunpack.c.l.b16 %v1631
    %v1669 = vunpack.c.l.b16 %v1632
    %v1670 = vunpack.c.l.b16 %v1633
    %v1671 = vunpack.c.l.b16 %v1634
    %v1672 = vunpack.c.l.b16 %v1635
    %v1673 = vunpack.c.l.b16 %v1636
    %v1674 = vpack.c.b16 %v1659, %v1658
    %v1675 = vpack.c.b16 %v1661, %v1660
    %v1676 = vpack.c.b16 %v1663, %v1662
    %v1677 = vpack.c.b16 %v1665, %v1664
    %v1678 = vpack.c.b16 %v1667, %v1666
    %v1679 = vpack.c.b16 %v1669, %v1668
    %v1680 = vpack.c.b16 %v1671, %v1670
    %v1681 = vpack.c.b16 %v1673, %v1672
    %1690 = vmatprep.subr.bf16.mxu0 0
    %1691 = vmatpush1.bf16.msra.mxu0 %v1674
    %1692 = vmatprep.subr.bf16.mxu0 0
    %1693 = vmatpush1.bf16.msra.mxu0 %v1675
    %1694 = vmatprep.subr.bf16.mxu0 0
    %1695 = vmatpush1.bf16.msra.mxu0 %v1676
    %1696 = vmatprep.subr.bf16.mxu0 0
    %1697 = vmatpush1.bf16.msra.mxu0 %v1677
    %1698 = vmatprep.subr.bf16.mxu0 0
    %1699 = vmatpush1.bf16.msra.mxu0 %v1678
    %1700 = vmatprep.subr.bf16.mxu0 0
    %1701 = vmatpush1.bf16.msra.mxu0 %v1679
    %1702 = vmatprep.subr.bf16.mxu0 0
    %1703 = vmatpush1.bf16.msra.mxu0 %v1680
    %1704 = vmatprep.subr.bf16.mxu0 0
    %1705 = vmatpush1.bf16.msra.mxu0 %v1681
    %1706 = vmatprep.subr.bf16.mxu0 0
    %1707 = vmatpush1.bf16.msra.mxu0 0
    %1708 = vmatprep.subr.bf16.mxu0 0
    %1709 = vmatpush1.bf16.msra.mxu0 0
    %1710 = vmatprep.subr.bf16.mxu0 0
    %1711 = vmatpush1.bf16.msra.mxu0 0
    %1712 = vmatprep.subr.bf16.mxu0 0
    %1713 = vmatpush1.bf16.msra.mxu0 0
    %1714 = vmatprep.subr.bf16.mxu0 0
    %1715 = vmatpush1.bf16.msra.mxu0 0
    %1716 = vmatprep.subr.bf16.mxu0 0
    %1717 = vmatpush1.bf16.msra.mxu0 0
    %1718 = vmatprep.subr.bf16.mxu0 0
    %1719 = vmatpush1.bf16.msra.mxu0 0
    %1720 = vmatprep.subr.bf16.mxu0 0
    %1721 = vmatpush1.bf16.msra.mxu0 0
    %1722 = vmatprep.mubr.bf16.mxu0 0
    %1723 = vmatmul.mubr.bf16.gmra.mrb[0].mxu0 %v1617
    %v1724 = vpop.f32.mrb[0].mxu0
    %v1725 = vadd.f32 %v1641, %v1724
    %v1726 = vpop.f32.mrb[0].mxu0
    %v1727 = vpop.f32.mrb[0].mxu0
    %v1728 = vadd.f32 %v1641, %v1727
    %v1729 = vpop.f32.mrb[0].mxu0
    %1730 = vmatprep.mubr.bf16.mxu0 0
    %1731 = vmatmul.mubr.bf16.gmra.mrb[0].mxu0 %v1618
    %v1732 = vpop.f32.mrb[0].mxu0
    %v1733 = vadd.f32 %v1641, %v1732
    %v1734 = vpop.f32.mrb[0].mxu0
    %v1735 = vpop.f32.mrb[0].mxu0
    %v1736 = vadd.f32 %v1641, %v1735
    %v1737 = vpop.f32.mrb[0].mxu0
    %1738 = vmatprep.mubr.bf16.mxu0 0
    %1739 = vmatmul.mubr.bf16.gmra.mrb[0].mxu0 %v1619
    %v1740 = vpop.f32.mrb[0].mxu0
    %v1741 = vadd.f32 %v1641, %v1740
    %v1742 = vpop.f32.mrb[0].mxu0
    %v1743 = vpop.f32.mrb[0].mxu0
    %v1744 = vadd.f32 %v1641, %v1743
    %v1745 = vpop.f32.mrb[0].mxu0
    %1746 = vmatprep.mubr.bf16.mxu0 0
    %1747 = vmatmul.mubr.bf16.gmra.mrb[0].mxu0 %v1620
    %v1748 = vpop.f32.mrb[0].mxu0
    %v1749 = vadd.f32 %v1641, %v1748
    %v1750 = vpop.f32.mrb[0].mxu0
    %v1751 = vpop.f32.mrb[0].mxu0
    %v1752 = vadd.f32 %v1641, %v1751
    %v1753 = vpop.f32.mrb[0].mxu0
    %1754 = vdwg.mxu0
    %v1755 = vsub.f32 0.0, %v1725
    %v1756 = vsub.f32 0.0, %v1728
    %v1757 = vsub.f32 0.0, %v1733
    %v1758 = vsub.f32 0.0, %v1736
    %v1759 = vsub.f32 0.0, %v1741
    %v1760 = vsub.f32 0.0, %v1744
    %v1761 = vsub.f32 0.0, %v1749
    %v1762 = vsub.f32 0.0, %v1752
    %v1763 = vmul.f32 %v1755, 1.442695
    %v1764 = vpow.pop %v1763
    %v1765 = vmul.f32 %v1756, 1.442695
    %v1766 = vpow.pop %v1765
    %v1767 = vmul.f32 %v1757, 1.442695
    %v1768 = vpow.pop %v1767
    %v1769 = vmul.f32 %v1758, 1.442695
    %v1770 = vpow.pop %v1769
    %v1771 = vmul.f32 %v1759, 1.442695
    %v1772 = vpow.pop %v1771
    %v1773 = vmul.f32 %v1760, 1.442695
    %v1774 = vpow.pop %v1773
    %v1775 = vmul.f32 %v1761, 1.442695
    %v1776 = vpow.pop %v1775
    %v1777 = vmul.f32 %v1762, 1.442695
    %v1778 = vpow.pop %v1777
    %v1779 = vadd.f32 %v1764, 1.0
    %v1780 = vadd.f32 %v1766, 1.0
    %v1781 = vadd.f32 %v1768, 1.0
    %v1782 = vadd.f32 %v1770, 1.0
    %v1783 = vadd.f32 %v1772, 1.0
    %v1784 = vadd.f32 %v1774, 1.0
    %v1785 = vadd.f32 %v1776, 1.0
    %v1786 = vadd.f32 %v1778, 1.0
    %v1787 = vrcp.pop %v1779
    %v1788 = vmul.f32 1.0, %v1787
    %v1789 = vrcp.pop %v1780
    %v1790 = vmul.f32 1.0, %v1789
    %v1791 = vrcp.pop %v1781
    %v1792 = vmul.f32 1.0, %v1791
    %v1793 = vrcp.pop %v1782
    %v1794 = vmul.f32 1.0, %v1793
    %v1795 = vrcp.pop %v1783
    %v1796 = vmul.f32 1.0, %v1795
    %v1797 = vrcp.pop %v1784
    %v1798 = vmul.f32 1.0, %v1797
    %v1799 = vrcp.pop %v1785
    %v1800 = vmul.f32 1.0, %v1799
    %v1801 = vrcp.pop %v1786
    %v1802 = vmul.f32 1.0, %v1801
    %1803 = vst [vmem:[#allocation11] sm:$0xff] %v1788
    %1804 = vst [vmem:[#allocation11 + $0x8] sm:$0xff] %v1790
    %1805 = vst [vmem:[#allocation11 + $0x10] sm:$0xff] %v1792
    %1806 = vst [vmem:[#allocation11 + $0x18] sm:$0xff] %v1794
    %1807 = vst [vmem:[#allocation11 + $0x20] sm:$0xff] %v1796
    %1808 = vst [vmem:[#allocation11 + $0x28] sm:$0xff] %v1798
    %1809 = vst [vmem:[#allocation11 + $0x30] sm:$0xff] %v1800
    %1810 = vst [vmem:[#allocation11 + $0x38] sm:$0xff] %v1802
    %vm1811 = vcmp.ge.f32.partialorder %v1105, 0.0
    %vm1812 = vcmp.ge.f32.partialorder %v1109, 0.0
    %vm1813 = vcmp.ge.f32.partialorder %v1115, 0.0
    %vm1814 = vcmp.ge.f32.partialorder %v1119, 0.0
    %vm1815 = vcmp.ge.f32.partialorder %v1125, 0.0
    %vm1816 = vcmp.ge.f32.partialorder %v1129, 0.0
    %vm1817 = vcmp.ge.f32.partialorder %v1135, 0.0
    %vm1818 = vcmp.ge.f32.partialorder %v1139, 0.0
    %v1819 = vmul.f32 %v1105, 0.2
    %v1820 = vmul.f32 %v1109, 0.2
    %v1821 = vmul.f32 %v1115, 0.2
    %v1822 = vmul.f32 %v1119, 0.2
    %v1823 = vmul.f32 %v1125, 0.2
    %v1824 = vmul.f32 %v1129, 0.2
    %v1825 = vmul.f32 %v1135, 0.2
    %v1826 = vmul.f32 %v1139, 0.2
    %v1827 = vsel %vm1811, %v1105, %v1819
    %v1828 = vsel %vm1812, %v1109, %v1820
    %v1829 = vsel %vm1813, %v1115, %v1821
    %v1830 = vsel %vm1814, %v1119, %v1822
    %v1831 = vsel %vm1815, %v1125, %v1823
    %v1832 = vsel %vm1816, %v1129, %v1824
    %v1833 = vsel %vm1817, %v1135, %v1825
    %v1834 = vsel %vm1818, %v1139, %v1826
    %v1835 = vld [vmem:[%s8 + $0x7] sm:$0x1]
    %v1836 = vlaneseq
    %v1837 = vshrl.u32 %v1836, 7
    %v1838 = vsub.s32 0, %v1837
    %v1839 = vrot.slane %v1835, %v1838
    %v1840 = vmul.f32 %v1827, %v1839
    %v1841 = vmul.f32 %v1828, %v1839
    %v1842 = vmul.f32 %v1829, %v1839
    %v1843 = vmul.f32 %v1830, %v1839
    %v1844 = vmul.f32 %v1831, %v1839
    %v1845 = vmul.f32 %v1832, %v1839
    %v1846 = vmul.f32 %v1833, %v1839
    %v1847 = vmul.f32 %v1834, %v1839
    %v1848 = vld [vmem:[%s8 + $0x8] sm:$0x1]
    %v1849 = vlaneseq
    %v1850 = vshrl.u32 %v1849, 7
    %v1851 = vsub.s32 0, %v1850
    %v1852 = vrot.slane %v1848, %v1851
    %v1853 = vadd.f32 %v1840, %v1852
    %v1854 = vadd.f32 %v1841, %v1852
    %v1855 = vadd.f32 %v1842, %v1852
    %v1856 = vadd.f32 %v1843, %v1852
    %v1857 = vadd.f32 %v1844, %v1852
    %v1858 = vadd.f32 %v1845, %v1852
    %v1859 = vadd.f32 %v1846, %v1852
    %v1860 = vadd.f32 %v1847, %v1852
    %1861 = vadd.xlane.f32.xlu0 %v1853
    %v1862 = vpop.xlane.xlu0 %1861
    %1863 = vadd.xlane.f32.xlu0 %v1854
    %v1864 = vpop.xlane.xlu0 %1863
    %1865 = vadd.xlane.f32.xlu0 %v1855
    %v1866 = vpop.xlane.xlu0 %1865
    %1867 = vadd.xlane.f32.xlu0 %v1856
    %v1868 = vpop.xlane.xlu0 %1867
    %1869 = vadd.xlane.f32.xlu0 %v1857
    %v1870 = vpop.xlane.xlu0 %1869
    %1871 = vadd.xlane.f32.xlu0 %v1858
    %v1872 = vpop.xlane.xlu0 %1871
    %1873 = vadd.xlane.f32.xlu0 %v1859
    %v1874 = vpop.xlane.xlu0 %1873
    %1875 = vadd.xlane.f32.xlu0 %v1860
    %v1876 = vpop.xlane.xlu0 %1875
    %v1877 = vlaneseq
    %v1878 = vand.u32 %v1877, 127
    %vm1879 = vcmp.eq.s32.totalorder %v1878, 64
    %vm1880 = vcmp.eq.s32.totalorder %v1878, 65
    %v1881 = vsel %vm1880, %v1862, %v769
    %v1882 = vsel %vm1880, %v1864, %v772
    %v1883 = vsel %vm1880, %v1866, %v777
    %v1884 = vsel %vm1880, %v1868, %v780
    %v1885 = vsel %vm1880, %v1870, %v785
    %v1886 = vsel %vm1880, %v1872, %v788
    %v1887 = vsel %vm1880, %v1874, %v793
    %v1888 = vsel %vm1880, %v1876, %v796
    %v1889 = vsel %vm1879, %v1447, %v1881
    %v1890 = vsel %vm1879, %v1449, %v1882
    %v1891 = vsel %vm1879, %v1451, %v1883
    %v1892 = vsel %vm1879, %v1453, %v1884
    %v1893 = vsel %vm1879, %v1455, %v1885
    %v1894 = vsel %vm1879, %v1457, %v1886
    %v1895 = vsel %vm1879, %v1459, %v1887
    %v1896 = vsel %vm1879, %v1461, %v1888
    %1897 = vst [vmem:[%s11] sm:$0xff] %v1889
    %1898 = vst [vmem:[%s11 + $0x8] sm:$0xff] %v1890
    %1899 = vst [vmem:[%s11 + $0x10] sm:$0xff] %v1891
    %1900 = vst [vmem:[%s11 + $0x18] sm:$0xff] %v1892
    %1901 = vst [vmem:[%s11 + $0x20] sm:$0xff] %v1893
    %1902 = vst [vmem:[%s11 + $0x28] sm:$0xff] %v1894
    %1903 = vst [vmem:[%s11 + $0x30] sm:$0xff] %v1895
    %1904 = vst [vmem:[%s11 + $0x38] sm:$0xff] %v1896
    // Predicated region
    $region54: #{fwd.1} parent=1 // pred_check
      _
    $region55: #{fwd.1} parent=1 // pred_check_branch
      %1906 = sbr.rel (0) target = $region57
    $region56: #{fwd.1} parent=1 // pred_region
      %s1908 = ssub.s32 1024, 1024
      %1909 = vsyncadd [#allocation4], %s1908
      %s1910 = sshll.u32 [#allocation10], 4
      %s1911 = int_to_ptr.vmem [resolvable:$true] %s1910
      %1916 = dma.vmem_to_hbm [thread:$0]  %s1911, 1024, %s9, [#allocation4], 128, 128, 8
    $region57: #{fwd.1} parent=1 // pred_fallthru
      _
    // Predicated region
    $region58: #{fwd.1} parent=1 // pred_check
      _
    $region59: #{fwd.1} parent=1 // pred_check_branch
      %1918 = sbr.rel (0) target = $region61
    $region60: #{fwd.1} parent=1 // pred_region
      %s1920 = ssub.s32 1024, 1024
      %1921 = vsyncadd [#allocation12], %s1920
      %s1922 = sshll.u32 [#allocation11], 4
      %s1923 = int_to_ptr.vmem [resolvable:$true] %s1922
      %1928 = dma.vmem_to_hbm [thread:$0]  %s1923, 1024, %s10, [#allocation12], 128, 128, 8
    $region61: #{fwd.1} parent=1 // pred_fallthru
      _
    // Predicated region
    $region62: #{fwd.1} parent=1 // pred_check
      _
    $region63: #{fwd.1} parent=1 // pred_check_branch
      %1930 = sbr.rel (0) target = $region65
    $region64: #{fwd.1} parent=1 // pred_region
      _
    $region65: #{fwd.1} parent=1 // pred_fallthru
      _
    // Predicated region
    $region66: #{fwd.1} parent=1 // pred_check
      _
    $region67: #{fwd.1} parent=1 // pred_check_branch
      %1932 = sbr.rel (0) target = $region69
    $region68: #{fwd.1} parent=1 // pred_region
      %1933 = dma.done [#allocation4], 1024
    $region69: #{fwd.1} parent=1 // pred_fallthru
      _
    // Predicated region
    $region70: #{fwd.1} parent=1 // pred_check
      _
    $region71: #{fwd.1} parent=1 // pred_check_branch
      %1935 = sbr.rel (0) target = $region73
    $region72: #{fwd.1} parent=1 // pred_region
      %1936 = dma.done [#allocation12], 1024
    $region73: #{fwd.1} parent=1 // pred_fallthru
      _
    // Predicated region
    $region74: #{fwd.1} parent=1 // pred_check
      _
    $region75: #{fwd.1} parent=1 // pred_check_branch
      %1938 = sbr.rel (0) target = $region77
    $region76: #{fwd.1} parent=1 // pred_region
      _
    $region77: #{fwd.1} parent=1 // pred_fallthru
      _
    %1939 = vsyncpa [#allocation3], 1
    %1940 = vsyncpa [#allocation6], 1
    %1941 = vsyncpa [#allocation9], 1
    %1942 = vsyncpa [#allocation4], 1
    %1943 = vsyncpa [#allocation12], 1

</llo_original>
